<compile_context>
chip_gen: v7x
topology: tpu7x:2x2x1
jax: 0.10.0
libtpu: 0.0.40
codegen_flags: <defaults>
</compile_context>

<pallas_src>
import functools

import jax
import jax.numpy as jnp
from jax import lax
from jax.experimental import pallas as pl
from jax.experimental.pallas import tpu as pltpu


def _channel_attention_kernel(x_ref, w1_ref, w2_ref, o_ref, *, hw_true, bt):
    # x_ref/o_ref: (bt, C, HWp) native dtype;  w1_ref: (Cr, C);  w2_ref: (C, Cr)
    HWp = x_ref.shape[-1]
    w1 = w1_ref[...].astype(jnp.float32)            # (Cr, C)  tiny
    w2 = w2_ref[...].astype(jnp.float32)            # (C, Cr)  tiny

    need_mask = HWp != hw_true
    if need_mask:
        # Hoisted once (JAX does not CSE broadcast_in_dim).
        lane = lax.broadcasted_iota(jnp.int32, (1, HWp), 1)
        pad_mask = lane < hw_true                    # (1, HWp)
    inv_hw = jnp.float32(1.0 / hw_true)
    neg = jnp.asarray(-jnp.inf, dtype=x_ref.dtype)

    for b in range(bt):                              # unrolled at trace time
        xb = x_ref[b]                                # (C, HWp), NO full-tile upcast

        # ---- adaptive avg pool: f32-accumulating lane reduce, /true HW ----
        ssum = jnp.sum(xb, axis=1, keepdims=True, dtype=jnp.float32)   # (C, 1)
        avg = ssum * inv_hw

        # ---- adaptive max pool: mask padded lanes, lane reduce ----
        xm = jnp.where(pad_mask, xb, neg) if need_mask else xb
        mx = jnp.max(xm, axis=1, keepdims=True).astype(jnp.float32)    # (C, 1)

        # ---- shared MLP (fc1 -> ReLU -> fc2) on each branch, f32/HIGHEST ----
        def mlp(p):                                  # p: (C, 1) f32
            h = jnp.maximum(
                jnp.dot(w1, p, preferred_element_type=jnp.float32,
                        precision=lax.Precision.HIGHEST), 0.0)         # (Cr, 1)
            return jnp.dot(w2, h, preferred_element_type=jnp.float32,
                           precision=lax.Precision.HIGHEST)            # (C, 1)

        scale = jax.nn.sigmoid(mlp(avg) + mlp(mx))                     # (C, 1) f32

        # ---- broadcast-multiply (per-vreg f32), store in input dtype ----
        o_ref[b] = (xb * scale).astype(o_ref.dtype)


def _pick_batch_block(B, tile_bytes, target_bytes=2 << 20):
    """Largest divisor of B such that the block stays small and grid >= 2."""
    if B <= 1:
        return 1
    cap = max(1, min(B // 2, target_bytes // max(tile_bytes, 1)))
    bt = 1
    for d in range(1, cap + 1):
        if B % d == 0:
            bt = d
    return bt


def channel_attention(x, w1, w2):
    """x: (B, C, H, W);  w1: (C//16, C);  w2: (C, C//16)."""
    B, C, H, W = x.shape
    Cr = w1.shape[0]
    HW = H * W

    # Lane-dense last dim: pad HW up to a multiple of 128 (zero pad; kernel
    # masks the max branch and divides by the true HW for the mean).
    HWp = ((HW + 127) // 128) * 128
    padded = HWp != HW
    xr = x.reshape(B, C, HW)
    if padded:
        xr = jnp.pad(xr, ((0, 0), (0, 0), (0, HWp - HW)))

    itemsize = jnp.dtype(x.dtype).itemsize
    tile_bytes = C * HWp * itemsize

    bt = _pick_batch_block(B, tile_bytes)
    grid_b = B // bt

    # VMEM budget: in + out blocks, double-buffered, + double-buffered weights
    # + slack; clamped to 85% of this generation's physical VMEM.
    block_bytes = bt * tile_bytes
    vmem_needed = 4 * block_bytes + 4 * (Cr * C * 4) + (2 << 20)
    try:
        vmem_cap = int(pltpu.get_tpu_info().vmem_capacity_bytes)
    except Exception:
        vmem_cap = 64 * 1024 * 1024
    vmem_limit = int(min(max(vmem_needed, 32 * 1024 * 1024), int(0.85 * vmem_cap)))
    # TODO(synk): two-phase (pool kernel -> XLA MLP -> scale kernel) fallback
    # when a single (bt, C, HWp) block exceeds the per-generation VMEM budget.

    # Memory-bound kernel: bytes dominate; flops are pooling + the scale-mul.
    cost = pl.CostEstimate(
        flops=3 * B * C * HWp + 8 * B * C * Cr,
        transcendentals=B * C,
        bytes_accessed=2 * B * C * HWp * itemsize,
    )

    kernel = functools.partial(_channel_attention_kernel, hw_true=HW, bt=bt)

    # Only alias when the wrapper built a fresh padded temp; aliasing a
    # reshape-view of a non-donated caller input would force a hidden copy.
    io_alias = {0: 0} if padded else {}

    out = pl.pallas_call(
        kernel,
        out_shape=jax.ShapeDtypeStruct((B, C, HWp), x.dtype),
        grid_spec=pltpu.PrefetchScalarGridSpec(
            num_scalar_prefetch=0,
            grid=(grid_b,),
            in_specs=[
                pl.BlockSpec((bt, C, HWp), lambda b: (b, 0, 0)),
                pl.BlockSpec((Cr, C), lambda b: (0, 0)),
                pl.BlockSpec((C, Cr), lambda b: (0, 0)),
            ],
            out_specs=pl.BlockSpec((bt, C, HWp), lambda b: (b, 0, 0)),
        ),
        compiler_params=pltpu.CompilerParams(
            dimension_semantics=(("parallel",) if grid_b >= 2 else ("arbitrary",)),
            vmem_limit_bytes=vmem_limit,
        ),
        input_output_aliases=io_alias,
        cost_estimate=cost,
    )(xr, w1, w2)

    if padded:
        out = out[:, :, :HW]
    return out.reshape(B, C, H, W)


def _reference(x, w1, w2):
    # Pure-JAX reference mirroring the PyTorch forward (exact f32 matmuls).
    avg = jnp.mean(x, axis=(2, 3), keepdims=True)        # (B, C, 1, 1)
    mx = jnp.max(x, axis=(2, 3), keepdims=True)          # (B, C, 1, 1)

    def mlp(p):                                          # p: (B, C, 1, 1)
        v = p[:, :, 0, 0]                                # (B, C)
        h = jnp.maximum(
            jnp.dot(v, w1.T, precision=lax.Precision.HIGHEST), 0.0)   # (B, Cr)
        o = jnp.dot(h, w2.T, precision=lax.Precision.HIGHEST)         # (B, C)
        return o[:, :, None, None]

    out = mlp(avg) + mlp(mx)
    return x * jax.nn.sigmoid(out)


def _run_case(key, B, C, H, W):
    Cr = max(1, C // 16)
    kx, k1, k2 = jax.random.split(key, 3)
    x = jax.random.normal(kx, (B, C, H, W), dtype=jnp.float32)
    # Deterministic synthetic weights (1x1 conv, bias=False -> just (out, in)).
    w1 = jax.random.normal(k1, (Cr, C), dtype=jnp.float32) * 0.1
    w2 = jax.random.normal(k2, (C, Cr), dtype=jnp.float32) * 0.1

    y = jax.jit(channel_attention)(x, w1, w2)
    y = jax.block_until_ready(y)

    y_ref = _reference(x, w1, w2)
    assert jnp.allclose(y, y_ref, atol=1e-5, rtol=1e-5), (
        f"mismatch vs reference for shape {(B, C, H, W)}")


if __name__ == "__main__":
    key = jax.random.PRNGKey(0)
    k0, k1 = jax.random.split(key)
    # Aligned HW (no padding), grid of 2 parallel steps.
    _run_case(k0, B=2, C=32, H=16, W=16)
    # Unaligned HW (pad 49 -> 128, masked max) + batch-blocked grid (bt=2).
    _run_case(k1, B=4, C=32, H=7, W=7)

    print("KERNEL_OK")
</pallas_src>

<mosaic_0001>
module attributes {stable_mosaic.version = 11 : i64} {
  func.func @_channel_attention_kernel(%arg0: i32, %arg1: memref<1x32x256xf32, #tpu.memory_space<vmem>>, %arg2: memref<2x32xf32, #tpu.memory_space<vmem>>, %arg3: memref<32x2xf32, #tpu.memory_space<vmem>>, %arg4: memref<1x32x256xf32, #tpu.memory_space<vmem>>) attributes {dimension_semantics = [#tpu.dimension_semantics<parallel>], iteration_bounds = array<i64: 2>, scalar_prefetch = 0 : i64, scratch_operands = 0 : i64, tpu.core_type = #tpu.core_type<tc>, window_params = [{transform_indices = @transform_0, window_bounds = array<i64: 1, 32, 256>}, {pipeline_mode = #tpu.pipeline_mode<synchronous>, transform_indices = @transform_1, window_bounds = array<i64: 2, 32>}, {pipeline_mode = #tpu.pipeline_mode<synchronous>, transform_indices = @transform_2, window_bounds = array<i64: 32, 2>}, {transform_indices = @transform_3, window_bounds = array<i64: 1, 32, 256>}]} {
    %c0 = arith.constant 0 : index
    %c0_0 = arith.constant 0 : index
    %0 = vector.load %arg2[%c0, %c0_0] : memref<2x32xf32, #tpu.memory_space<vmem>>, vector<2x32xf32>
    %c0_1 = arith.constant 0 : index
    %c0_2 = arith.constant 0 : index
    %1 = vector.load %arg3[%c0_1, %c0_2] : memref<32x2xf32, #tpu.memory_space<vmem>>, vector<32x2xf32>
    %c0_3 = arith.constant 0 : index
    %c0_4 = arith.constant 0 : index
    %c0_5 = arith.constant 0 : index
    %2 = vector.load %arg1[%c0_3, %c0_4, %c0_5] : memref<1x32x256xf32, #tpu.memory_space<vmem>>, vector<1x32x256xf32>
    %3 = vector.shape_cast %2 : vector<1x32x256xf32> to vector<32x256xf32>
    %cst = arith.constant dense<0.000000e+00> : vector<32xf32>
    %4 = vector.multi_reduction <add>, %3, %cst [1] : vector<32x256xf32> to vector<32xf32>
    %5 = vector.shape_cast %4 : vector<32xf32> to vector<32x1xf32>
    %cst_6 = arith.constant 3.906250e-03 : f32
    %6 = vector.broadcast %cst_6 : f32 to vector<32x1xf32>
    %7 = arith.mulf %5, %6 : vector<32x1xf32>
    %cst_7 = arith.constant dense<0xFF800000> : vector<32xf32>
    %8 = vector.multi_reduction <maximumf>, %3, %cst_7 [1] : vector<32x256xf32> to vector<32xf32>
    %9 = vector.shape_cast %8 : vector<32xf32> to vector<32x1xf32>
    %cst_8 = arith.constant dense<0.000000e+00> : vector<2x1xf32>
    %10 = tpu.matmul %0, %7, %cst_8 {dimension_numbers = #tpu.dot_dimension_numbers<[1], [0], [0], [1], [0, 0, 1, 1], [], []>, precision = #tpu.contract_precision<fp32>} : vector<2x32xf32>, vector<32x1xf32>, vector<2x1xf32> -> vector<2x1xf32>
    %cst_9 = arith.constant 0.000000e+00 : f32
    %11 = vector.broadcast %cst_9 : f32 to vector<2x1xf32>
    %12 = arith.maximumf %10, %11 : vector<2x1xf32>
    %cst_10 = arith.constant dense<0.000000e+00> : vector<32x1xf32>
    %13 = tpu.matmul %1, %12, %cst_10 {dimension_numbers = #tpu.dot_dimension_numbers<[1], [0], [0], [1], [0, 0, 1, 1], [], []>, precision = #tpu.contract_precision<fp32>} : vector<32x2xf32>, vector<2x1xf32>, vector<32x1xf32> -> vector<32x1xf32>
    %cst_11 = arith.constant dense<0.000000e+00> : vector<2x1xf32>
    %14 = tpu.matmul %0, %9, %cst_11 {dimension_numbers = #tpu.dot_dimension_numbers<[1], [0], [0], [1], [0, 0, 1, 1], [], []>, precision = #tpu.contract_precision<fp32>} : vector<2x32xf32>, vector<32x1xf32>, vector<2x1xf32> -> vector<2x1xf32>
    %cst_12 = arith.constant 0.000000e+00 : f32
    %15 = vector.broadcast %cst_12 : f32 to vector<2x1xf32>
    %16 = arith.maximumf %14, %15 : vector<2x1xf32>
    %cst_13 = arith.constant dense<0.000000e+00> : vector<32x1xf32>
    %17 = tpu.matmul %1, %16, %cst_13 {dimension_numbers = #tpu.dot_dimension_numbers<[1], [0], [0], [1], [0, 0, 1, 1], [], []>, precision = #tpu.contract_precision<fp32>} : vector<32x2xf32>, vector<2x1xf32>, vector<32x1xf32> -> vector<32x1xf32>
    %18 = arith.addf %13, %17 : vector<32x1xf32>
    %19 = arith.negf %18 : vector<32x1xf32>
    %20 = math.exp %19 : vector<32x1xf32>
    %cst_14 = arith.constant 1.000000e+00 : f32
    %21 = vector.broadcast %cst_14 : f32 to vector<32x1xf32>
    %22 = arith.addf %21, %20 : vector<32x1xf32>
    %23 = arith.divf %21, %22 : vector<32x1xf32>
    %24 = vector.broadcast %23 : vector<32x1xf32> to vector<32x256xf32>
    %25 = arith.mulf %3, %24 : vector<32x256xf32>
    %c0_15 = arith.constant 0 : index
    %c0_16 = arith.constant 0 : index
    %c0_17 = arith.constant 0 : index
    %26 = vector.load %arg4[%c0_15, %c0_16, %c0_17] : memref<1x32x256xf32, #tpu.memory_space<vmem>>, vector<1x32x256xf32>
    %27 = vector.shape_cast %26 : vector<1x32x256xf32> to vector<32x256xf32>
    %28 = vector.shape_cast %25 : vector<32x256xf32> to vector<1x32x256xf32>
    tpu.vector_store %arg4[%c0_15, %c0_16, %c0_17], %28 {strides = array<i32>} : memref<1x32x256xf32, #tpu.memory_space<vmem>>, vector<1x32x256xf32>,
    return
  }
  func.func @transform_0(%arg0: i32) -> (i32, i32, i32) {
    %c0_i32 = arith.constant 0 : i32
    %c0_i32_0 = arith.constant 0 : i32
    %c0_i32_1 = arith.constant 0 : i32
    return %arg0, %c0_i32, %c0_i32_0 : i32, i32, i32
  }
  func.func @transform_1(%arg0: i32) -> (i32, i32) {
    %c0_i32 = arith.constant 0 : i32
    %c0_i32_0 = arith.constant 0 : i32
    %c0_i32_1 = arith.constant 0 : i32
    return %c0_i32, %c0_i32_0 : i32, i32
  }
  func.func @transform_2(%arg0: i32) -> (i32, i32) {
    %c0_i32 = arith.constant 0 : i32
    %c0_i32_0 = arith.constant 0 : i32
    %c0_i32_1 = arith.constant 0 : i32
    return %c0_i32, %c0_i32_0 : i32, i32
  }
  func.func @transform_3(%arg0: i32) -> (i32, i32, i32) {
    %c0_i32 = arith.constant 0 : i32
    %c0_i32_0 = arith.constant 0 : i32
    %c0_i32_1 = arith.constant 0 : i32
    return %arg0, %c0_i32, %c0_i32_0 : i32, i32, i32
  }
}

</mosaic_0001>

<llo_original>
// kernel: channel_attention.1
$region0: #{channel_attention.1}
  #allocation0 [shape = 'u32[]', space=smem, size = 0x4, offset = 0x4, fixed_abs, tag = 'smem constant byte address 0x4 - core index']
  #allocation1 [shape = 'u32[144,128]{1,0:T(1,128)}', space=vmem, size = 0x12000, scoped, tag = 'internal scratch']
  %s0 = inlined_call_operand.vmem [shape: f32[2,32,256], index: 0, kind: input, shape index: {}]
  %s1 = inlined_call_operand.vmem [shape: f32[2,32], index: 1, kind: input, shape index: {}]
  %s2 = inlined_call_operand.vmem [shape: f32[32,2], index: 2, kind: input, shape index: {}]
  %s3 = inlined_call_operand.vmem [shape: f32[2,32,256], index: 3, kind: output, shape index: {}]
  %s4 = sld [smem:[#allocation0]]
  $region45: #{channel_attention.1} parent=0
    _
  %s6 = ssub.s32 1, %s4
  %s7 = scalar_select 0, %s6, %s4
  loop: start=0, step=1, limit=4
  $region2: #{channel_attention.1} parent=0 // loop_pre_header
    _
  $region3: #{channel_attention.1} parent=0 // loop_header
    %s9 = sphi 0, %s13
    %p10 = scmp.ge.s32.totalorder %s9, 4
    %s19 = sphi 0, %s21
    %s22 = sphi 0, %s19
    %s23 = sphi 0, %s22
    %s39 = sphi 0, %s23
    %s43 = sphi 0, %s43
    %s45 = sphi 0, %s43
    %s46 = sphi 0, %s45
    %s60 = sphi 0, %s46
    %s64 = sphi 0, %s64
    %s66 = sphi 0, %s64
    %s67 = sphi 0, %s66
    %s81 = sphi 0, %s67
    %s87 = sphi 0, %s89
    %s90 = sphi 0, %s87
    %s91 = sphi 0, %s90
    %s107 = sphi 0, %s91
  $region4: #{channel_attention.1} parent=0 // loop_header_branch
    %12 = sbr.rel (%p10) target = $region8
  $region5: #{channel_attention.1} parent=0 // loop_body
    %s14 = ssub.s32 %s9, 1
    %s15 = ssub.s32 %s9, 2
    %s16 = sadd.s32 %s9, 1
    %s17 = ssub.s32 %s9, %s16
    %p18 = scmp.eq.s32.totalorder %s17, 0
    %s20 = sadd.s32 %s19, 1
    %s21 = scalar_select %p18, %s19, %s20
    %p24 = pneg %p18
    %p25 = scmp.eq.s32.totalorder %s9, 1
    %p26 = por %p24, %p25
    %p27 = scmp.ne.s32.totalorder %s19, %s22
    %p28 = scmp.eq.s32.totalorder %s9, 0
    %p29 = por %p27, %p28
    %p30 = scmp.ne.s32.totalorder %s19, %s22
    %p31 = scmp.eq.s32.totalorder %s14, 1
    %p32 = por %p30, %p31
    %p33 = scmp.ne.s32.totalorder %s22, %s23
    %p34 = scmp.eq.s32.totalorder %s14, 0
    %p35 = por %p33, %p34
    %p36 = scmp.ne.s32.totalorder %s22, %s23
    %p37 = scmp.eq.s32.totalorder %s15, 1
    %p38 = por %p36, %p37
    %p40 = scmp.ne.s32.totalorder %s23, %s39
    %p41 = scmp.eq.s32.totalorder %s15, 0
    %p42 = por %p40, %p41
    %s44 = sadd.s32 %s43, 1
    %p47 = scmp.eq.s32.totalorder %s9, 1
    %p48 = scmp.ne.s32.totalorder %s43, %s45
    %p49 = scmp.eq.s32.totalorder %s9, 0
    %p50 = por %p48, %p49
    %p51 = scmp.ne.s32.totalorder %s43, %s45
    %p52 = scmp.eq.s32.totalorder %s14, 1
    %p53 = por %p51, %p52
    %p54 = scmp.ne.s32.totalorder %s45, %s46
    %p55 = scmp.eq.s32.totalorder %s14, 0
    %p56 = por %p54, %p55
    %p57 = scmp.ne.s32.totalorder %s45, %s46
    %p58 = scmp.eq.s32.totalorder %s15, 1
    %p59 = por %p57, %p58
    %p61 = scmp.ne.s32.totalorder %s46, %s60
    %p62 = scmp.eq.s32.totalorder %s15, 0
    %p63 = por %p61, %p62
    %s65 = sadd.s32 %s64, 1
    %p68 = scmp.eq.s32.totalorder %s9, 1
    %p69 = scmp.ne.s32.totalorder %s64, %s66
    %p70 = scmp.eq.s32.totalorder %s9, 0
    %p71 = por %p69, %p70
    %p72 = scmp.ne.s32.totalorder %s64, %s66
    %p73 = scmp.eq.s32.totalorder %s14, 1
    %p74 = por %p72, %p73
    %p75 = scmp.ne.s32.totalorder %s66, %s67
    %p76 = scmp.eq.s32.totalorder %s14, 0
    %p77 = por %p75, %p76
    %p78 = scmp.ne.s32.totalorder %s66, %s67
    %p79 = scmp.eq.s32.totalorder %s15, 1
    %p80 = por %p78, %p79
    %p82 = scmp.ne.s32.totalorder %s67, %s81
    %p83 = scmp.eq.s32.totalorder %s15, 0
    %p84 = por %p82, %p83
    %s85 = ssub.s32 %s9, %s16
    %p86 = scmp.eq.s32.totalorder %s85, 0
    %s88 = sadd.s32 %s87, 1
    %s89 = scalar_select %p86, %s87, %s88
    %p92 = pneg %p86
    %p93 = scmp.eq.s32.totalorder %s9, 1
    %p94 = por %p92, %p93
    %p95 = scmp.ne.s32.totalorder %s87, %s90
    %p96 = scmp.eq.s32.totalorder %s9, 0
    %p97 = por %p95, %p96
    %p98 = scmp.ne.s32.totalorder %s87, %s90
    %p99 = scmp.eq.s32.totalorder %s14, 1
    %p100 = por %p98, %p99
    %p101 = scmp.ne.s32.totalorder %s90, %s91
    %p102 = scmp.eq.s32.totalorder %s14, 0
    %p103 = por %p101, %p102
    %p104 = scmp.ne.s32.totalorder %s90, %s91
    %p105 = scmp.eq.s32.totalorder %s15, 1
    %p106 = por %p104, %p105
    %p108 = scmp.ne.s32.totalorder %s91, %s107
    %p109 = scmp.eq.s32.totalorder %s15, 0
    %p110 = por %p108, %p109
    %p111 = scmp.le.s32.totalorder 1, %s9
    %p112 = scmp.lt.s32.totalorder %s9, 3
    %p113 = pnand %p111, %p112
    %p114 = pneg %p113
    // Predicated region
    $region9: #{channel_attention.1} parent=5 // pred_check
      _
    $region10: #{channel_attention.1} parent=5 // pred_check_branch
      %116 = sbr.rel (%p113) target = $region12
    $region11: #{channel_attention.1} parent=5 // pred_region
      %s117 = ssub.s32 %s9, 1
      // Predicated region
      $region13: #{channel_attention.1} parent=11 // pred_check
        %p118 = pneg %p56
      $region14: #{channel_attention.1} parent=11 // pred_check_branch
        %120 = sbr.rel (%p118) target = $region16
      $region15: #{channel_attention.1} parent=11 // pred_region
        _
      $region16: #{channel_attention.1} parent=11 // pred_fallthru
        _
      // Predicated region
      $region17: #{channel_attention.1} parent=11 // pred_check
        %p121 = pneg %p77
      $region18: #{channel_attention.1} parent=11 // pred_check_branch
        %123 = sbr.rel (%p121) target = $region20
      $region19: #{channel_attention.1} parent=11 // pred_region
        _
      $region20: #{channel_attention.1} parent=11 // pred_fallthru
        _
    $region12: #{channel_attention.1} parent=5 // pred_fallthru
      _
    %p124 = scmp.lt.s32.totalorder %s9, 2
    // Predicated region
    $region21: #{channel_attention.1} parent=5 // pred_check
      %p125 = pneg %p124
    $region22: #{channel_attention.1} parent=5 // pred_check_branch
      %127 = sbr.rel (%p125) target = $region24
    $region23: #{channel_attention.1} parent=5 // pred_region
      // Predicated region
      $region25: #{channel_attention.1} parent=23 // pred_check
        %p128 = pneg %p29
      $region26: #{channel_attention.1} parent=23 // pred_check_branch
        %130 = sbr.rel (%p128) target = $region28
      $region27: #{channel_attention.1} parent=23 // pred_region
        %p131 = scmp.lt.s32.totalorder %s9, 1
        %s132 = scalar_select %p131, %s9, 1
        %s133 = smul.addr %s132, 8
        %s134 = smul.addr %s133, 8
        %s135 = scalar_lea.vmem %s0, %s134
      $region28: #{channel_attention.1} parent=23 // pred_fallthru
        _
    $region24: #{channel_attention.1} parent=5 // pred_fallthru
      _
    %p136 = scmp.le.s32.totalorder 1, %s9
    %p137 = scmp.lt.s32.totalorder %s9, 3
    %p138 = pnand %p136, %p137
    %p139 = pneg %p138
    // Predicated region
    $region29: #{channel_attention.1} parent=5 // pred_check
      _
    $region30: #{channel_attention.1} parent=5 // pred_check_branch
      %141 = sbr.rel (%p138) target = $region32
    $region31: #{channel_attention.1} parent=5 // pred_region
      %s142 = ssub.s32 %s9, 1
      %p143 = scmp.lt.s32.totalorder %s14, 1
      %s144 = scalar_select %p143, %s14, 1
      %s145 = smul.addr %s144, 8
      %s146 = smul.addr %s145, 8
      %s147 = scalar_lea.vmem %s0, %s146
      %p148 = pneg %p35
      %p149 = pneg %p32
      %p150 = pneg %p56
      %p151 = pneg %p53
      %p152 = pneg %p77
      %p153 = pneg %p74
      %p154 = pneg %p103
      %p155 = pneg %p100
      %p156 = scmp.lt.s32.totalorder %s14, 1
      %s157 = scalar_select %p156, %s14, 1
      %s158 = smul.addr %s157, 8
      %s159 = smul.addr %s158, 8
      %s160 = scalar_lea.vmem %s3, %s159
      %p161 = scmp.lt.s32.totalorder %s14, 1
      %s162 = scalar_select %p161, %s14, 1
      %s163 = smul.addr %s162, 8
      %s164 = smul.addr %s163, 8
      %s165 = scalar_lea.vmem %s0, %s164
      %p166 = scmp.lt.s32.totalorder %s14, 1
      %s167 = scalar_select %p166, %s14, 1
      %s168 = smul.addr %s167, 8
      %s169 = smul.addr %s168, 8
      %s170 = scalar_lea.vmem %s3, %s169
      %v171 = vld [vmem:[%s1] sm:$0x3]
      %v172 = vld [vmem:[%s2] sm:$0xff]
      %v173 = vld [vmem:[%s2 + $0x8] sm:$0xff]
      %v174 = vld [vmem:[%s2 + $0x10] sm:$0xff]
      %v175 = vld [vmem:[%s2 + $0x18] sm:$0xff]
      %v176 = vld [vmem:[%s165] sm:$0xff]
      %v177 = vld [vmem:[%s165 + $0x8] sm:$0xff]
      %v178 = vld [vmem:[%s165 + $0x10] sm:$0xff]
      %v179 = vld [vmem:[%s165 + $0x18] sm:$0xff]
      %v180 = vld [vmem:[%s165 + $0x20] sm:$0xff]
      %v181 = vld [vmem:[%s165 + $0x28] sm:$0xff]
      %v182 = vld [vmem:[%s165 + $0x30] sm:$0xff]
      %v183 = vld [vmem:[%s165 + $0x38] sm:$0xff]
      %v184 = vadd.f32 %v176, %v177
      %185 = vadd.xlane.f32.xlu0 %v184
      %v186 = vpop.xlane.xlu0 %185
      %v187 = vadd.f32 %v178, %v179
      %188 = vadd.xlane.f32.xlu0 %v187
      %v189 = vpop.xlane.xlu0 %188
      %v190 = vadd.f32 %v180, %v181
      %191 = vadd.xlane.f32.xlu0 %v190
      %v192 = vpop.xlane.xlu0 %191
      %v193 = vadd.f32 %v182, %v183
      %194 = vadd.xlane.f32.xlu0 %v193
      %v195 = vpop.xlane.xlu0 %194
      %v196 = vmul.f32 %v186, 0.00390625
      %v197 = vmul.f32 %v189, 0.00390625
      %v198 = vmul.f32 %v192, 0.00390625
      %v199 = vmul.f32 %v195, 0.00390625
      %v200 = vmax.f32 %v176, %v177
      %201 = vmax.xlane.f32.xlu0 %v200
      %v202 = vpop.xlane.xlu0 %201
      %v203 = vmax.f32 %v178, %v179
      %204 = vmax.xlane.f32.xlu0 %v203
      %v205 = vpop.xlane.xlu0 %204
      %v206 = vmax.f32 %v180, %v181
      %207 = vmax.xlane.f32.xlu0 %v206
      %v208 = vpop.xlane.xlu0 %207
      %v209 = vmax.f32 %v182, %v183
      %210 = vmax.xlane.f32.xlu0 %v209
      %v211 = vpop.xlane.xlu0 %210
      %vm212 = vcmask 261120
      %v214 = vsel %vm212, %v171, 0
      %216 = vmatprep.subr.mxu0 0.0
      %v217 = vand.u32 %v196, 4294901760
      %218 = vmatpush1.msra.mxu0 %v217
      %219 = vmatprep.subr.mxu0 0.0
      %v220 = vand.u32 %v197, 4294901760
      %221 = vmatpush1.msra.mxu0 %v220
      %222 = vmatprep.subr.mxu0 0.0
      %v223 = vand.u32 %v198, 4294901760
      %224 = vmatpush1.msra.mxu0 %v223
      %225 = vmatprep.subr.mxu0 0.0
      %v226 = vand.u32 %v199, 4294901760
      %227 = vmatpush1.msra.mxu0 %v226
      %228 = vmatprep.subr.mxu0 0.0
      %229 = vmatpush1.msra.mxu0 0.0
      %230 = vmatprep.subr.mxu0 0.0
      %231 = vmatpush1.msra.mxu0 0.0
      %232 = vmatprep.subr.mxu0 0.0
      %233 = vmatpush1.msra.mxu0 0.0
      %234 = vmatprep.subr.mxu0 0.0
      %235 = vmatpush1.msra.mxu0 0.0
      %236 = vmatprep.subr.mxu0 0.0
      %237 = vmatpush1.msra.mxu0 0.0
      %238 = vmatprep.subr.mxu0 0.0
      %239 = vmatpush1.msra.mxu0 0.0
      %240 = vmatprep.subr.mxu0 0.0
      %241 = vmatpush1.msra.mxu0 0.0
      %242 = vmatprep.subr.mxu0 0.0
      %243 = vmatpush1.msra.mxu0 0.0
      %244 = vmatprep.subr.mxu0 0.0
      %245 = vmatpush1.msra.mxu0 0.0
      %246 = vmatprep.subr.mxu0 0.0
      %247 = vmatpush1.msra.mxu0 0.0
      %248 = vmatprep.subr.mxu0 0.0
      %249 = vmatpush1.msra.mxu0 0.0
      %250 = vmatprep.subr.mxu0 0.0
      %251 = vmatpush1.msra.mxu0 0.0
      %252 = vmatprep.subr.mxu0 0.0
      %253 = vmatpush1.msra.mxu0 0.0
      %254 = vmatprep.subr.mxu0 0.0
      %255 = vmatpush1.msra.mxu0 0.0
      %256 = vmatprep.subr.mxu0 0.0
      %257 = vmatpush1.msra.mxu0 0.0
      %258 = vmatprep.subr.mxu0 0.0
      %259 = vmatpush1.msra.mxu0 0.0
      %260 = vmatprep.subr.mxu0 0.0
      %261 = vmatpush1.msra.mxu0 0.0
      %262 = vmatprep.subr.mxu0 0.0
      %263 = vmatpush1.msra.mxu0 0.0
      %264 = vmatprep.subr.mxu0 0.0
      %265 = vmatpush1.msra.mxu0 0.0
      %266 = vmatprep.subr.mxu0 0.0
      %267 = vmatpush1.msra.mxu0 0.0
      %268 = vmatprep.subr.mxu0 0.0
      %269 = vmatpush1.msra.mxu0 0.0
      %270 = vmatprep.subr.mxu0 0.0
      %271 = vmatpush1.msra.mxu0 0.0
      %272 = vmatprep.subr.mxu0 0.0
      %273 = vmatpush1.msra.mxu0 0.0
      %274 = vmatprep.subr.mxu0 0.0
      %275 = vmatpush1.msra.mxu0 0.0
      %276 = vmatprep.subr.mxu0 0.0
      %277 = vmatpush1.msra.mxu0 0.0
      %278 = vmatprep.subr.mxu0 0.0
      %279 = vmatpush1.msra.mxu0 0.0
      %280 = vmatprep.subr.mxu0 0.0
      %281 = vmatpush1.msra.mxu0 0.0
      %282 = vmatprep.subr.mxu0 0.0
      %283 = vmatpush1.msra.mxu0 0.0
      %284 = vmatprep.mubr.f32.mxu0 0.0
      %v285 = vand.u32 %v214, 4294901760
      %v286 = vsub.f32 %v214, %v285
      %v287 = vand.u32 %v286, 4294901760
      %v288 = vsub.f32 %v286, %v287
      %v289 = vand.u32 %v288, 4294901760
      %290 = vmatmul.mubr.f32.gmra.mrb[0].mxu0 %v289
      %v291 = vpop.f32.mrb[0].mxu0
      %v292 = vadd.f32 0.0, %v291
      %v293 = vpop.f32.mrb[0].mxu0
      %294 = vdwg.mxu0
      %295 = vmatprep.subr.mxu0 0.0
      %v296 = vand.u32 %v196, 4294901760
      %v297 = vsub.f32 %v196, %v296
      %v298 = vand.u32 %v297, 4294901760
      %v299 = vsub.f32 %v297, %v298
      %v300 = vand.u32 %v299, 4294901760
      %301 = vmatpush1.msra.mxu0 %v300
      %302 = vmatprep.subr.mxu0 0.0
      %v303 = vand.u32 %v197, 4294901760
      %v304 = vsub.f32 %v197, %v303
      %v305 = vand.u32 %v304, 4294901760
      %v306 = vsub.f32 %v304, %v305
      %v307 = vand.u32 %v306, 4294901760
      %308 = vmatpush1.msra.mxu0 %v307
      %309 = vmatprep.subr.mxu0 0.0
      %v310 = vand.u32 %v198, 4294901760
      %v311 = vsub.f32 %v198, %v310
      %v312 = vand.u32 %v311, 4294901760
      %v313 = vsub.f32 %v311, %v312
      %v314 = vand.u32 %v313, 4294901760
      %315 = vmatpush1.msra.mxu0 %v314
      %316 = vmatprep.subr.mxu0 0.0
      %v317 = vand.u32 %v199, 4294901760
      %v318 = vsub.f32 %v199, %v317
      %v319 = vand.u32 %v318, 4294901760
      %v320 = vsub.f32 %v318, %v319
      %v321 = vand.u32 %v320, 4294901760
      %322 = vmatpush1.msra.mxu0 %v321
      %323 = vmatprep.subr.mxu0 0.0
      %324 = vmatpush1.msra.mxu0 0.0
      %325 = vmatprep.subr.mxu0 0.0
      %326 = vmatpush1.msra.mxu0 0.0
      %327 = vmatprep.subr.mxu0 0.0
      %328 = vmatpush1.msra.mxu0 0.0
      %329 = vmatprep.subr.mxu0 0.0
      %330 = vmatpush1.msra.mxu0 0.0
      %331 = vmatprep.subr.mxu0 0.0
      %332 = vmatpush1.msra.mxu0 0.0
      %333 = vmatprep.subr.mxu0 0.0
      %334 = vmatpush1.msra.mxu0 0.0
      %335 = vmatprep.subr.mxu0 0.0
      %336 = vmatpush1.msra.mxu0 0.0
      %337 = vmatprep.subr.mxu0 0.0
      %338 = vmatpush1.msra.mxu0 0.0
      %339 = vmatprep.subr.mxu0 0.0
      %340 = vmatpush1.msra.mxu0 0.0
      %341 = vmatprep.subr.mxu0 0.0
      %342 = vmatpush1.msra.mxu0 0.0
      %343 = vmatprep.subr.mxu0 0.0
      %344 = vmatpush1.msra.mxu0 0.0
      %345 = vmatprep.subr.mxu0 0.0
      %346 = vmatpush1.msra.mxu0 0.0
      %347 = vmatprep.subr.mxu0 0.0
      %348 = vmatpush1.msra.mxu0 0.0
      %349 = vmatprep.subr.mxu0 0.0
      %350 = vmatpush1.msra.mxu0 0.0
      %351 = vmatprep.subr.mxu0 0.0
      %352 = vmatpush1.msra.mxu0 0.0
      %353 = vmatprep.subr.mxu0 0.0
      %354 = vmatpush1.msra.mxu0 0.0
      %355 = vmatprep.subr.mxu0 0.0
      %356 = vmatpush1.msra.mxu0 0.0
      %357 = vmatprep.subr.mxu0 0.0
      %358 = vmatpush1.msra.mxu0 0.0
      %359 = vmatprep.subr.mxu0 0.0
      %360 = vmatpush1.msra.mxu0 0.0
      %361 = vmatprep.subr.mxu0 0.0
      %362 = vmatpush1.msra.mxu0 0.0
      %363 = vmatprep.subr.mxu0 0.0
      %364 = vmatpush1.msra.mxu0 0.0
      %365 = vmatprep.subr.mxu0 0.0
      %366 = vmatpush1.msra.mxu0 0.0
      %367 = vmatprep.subr.mxu0 0.0
      %368 = vmatpush1.msra.mxu0 0.0
      %369 = vmatprep.subr.mxu0 0.0
      %370 = vmatpush1.msra.mxu0 0.0
      %371 = vmatprep.subr.mxu0 0.0
      %372 = vmatpush1.msra.mxu0 0.0
      %373 = vmatprep.subr.mxu0 0.0
      %374 = vmatpush1.msra.mxu0 0.0
      %375 = vmatprep.subr.mxu0 0.0
      %376 = vmatpush1.msra.mxu0 0.0
      %377 = vmatprep.subr.mxu0 0.0
      %378 = vmatpush1.msra.mxu0 0.0
      %379 = vmatprep.mubr.f32.mxu0 0.0
      %v380 = vand.u32 %v214, 4294901760
      %381 = vmatmul.mubr.f32.gmra.mrb[0].mxu0 %v380
      %v382 = vpop.f32.mrb[0].mxu0
      %v383 = vadd.f32 %v292, %v382
      %v384 = vpop.f32.mrb[0].mxu0
      %385 = vdwg.mxu0
      %386 = vmatprep.subr.mxu0 0.0
      %v387 = vand.u32 %v196, 4294901760
      %v388 = vsub.f32 %v196, %v387
      %389 = vmatpush1.msra.mxu0 %v388
      %390 = vmatprep.subr.mxu0 0.0
      %v391 = vand.u32 %v197, 4294901760
      %v392 = vsub.f32 %v197, %v391
      %393 = vmatpush1.msra.mxu0 %v392
      %394 = vmatprep.subr.mxu0 0.0
      %v395 = vand.u32 %v198, 4294901760
      %v396 = vsub.f32 %v198, %v395
      %397 = vmatpush1.msra.mxu0 %v396
      %398 = vmatprep.subr.mxu0 0.0
      %v399 = vand.u32 %v199, 4294901760
      %v400 = vsub.f32 %v199, %v399
      %401 = vmatpush1.msra.mxu0 %v400
      %402 = vmatprep.subr.mxu0 0.0
      %403 = vmatpush1.msra.mxu0 0.0
      %404 = vmatprep.subr.mxu0 0.0
      %405 = vmatpush1.msra.mxu0 0.0
      %406 = vmatprep.subr.mxu0 0.0
      %407 = vmatpush1.msra.mxu0 0.0
      %408 = vmatprep.subr.mxu0 0.0
      %409 = vmatpush1.msra.mxu0 0.0
      %410 = vmatprep.subr.mxu0 0.0
      %411 = vmatpush1.msra.mxu0 0.0
      %412 = vmatprep.subr.mxu0 0.0
      %413 = vmatpush1.msra.mxu0 0.0
      %414 = vmatprep.subr.mxu0 0.0
      %415 = vmatpush1.msra.mxu0 0.0
      %416 = vmatprep.subr.mxu0 0.0
      %417 = vmatpush1.msra.mxu0 0.0
      %418 = vmatprep.subr.mxu0 0.0
      %419 = vmatpush1.msra.mxu0 0.0
      %420 = vmatprep.subr.mxu0 0.0
      %421 = vmatpush1.msra.mxu0 0.0
      %422 = vmatprep.subr.mxu0 0.0
      %423 = vmatpush1.msra.mxu0 0.0
      %424 = vmatprep.subr.mxu0 0.0
      %425 = vmatpush1.msra.mxu0 0.0
      %426 = vmatprep.subr.mxu0 0.0
      %427 = vmatpush1.msra.mxu0 0.0
      %428 = vmatprep.subr.mxu0 0.0
      %429 = vmatpush1.msra.mxu0 0.0
      %430 = vmatprep.subr.mxu0 0.0
      %431 = vmatpush1.msra.mxu0 0.0
      %432 = vmatprep.subr.mxu0 0.0
      %433 = vmatpush1.msra.mxu0 0.0
      %434 = vmatprep.subr.mxu0 0.0
      %435 = vmatpush1.msra.mxu0 0.0
      %436 = vmatprep.subr.mxu0 0.0
      %437 = vmatpush1.msra.mxu0 0.0
      %438 = vmatprep.subr.mxu0 0.0
      %439 = vmatpush1.msra.mxu0 0.0
      %440 = vmatprep.subr.mxu0 0.0
      %441 = vmatpush1.msra.mxu0 0.0
      %442 = vmatprep.subr.mxu0 0.0
      %443 = vmatpush1.msra.mxu0 0.0
      %444 = vmatprep.subr.mxu0 0.0
      %445 = vmatpush1.msra.mxu0 0.0
      %446 = vmatprep.subr.mxu0 0.0
      %447 = vmatpush1.msra.mxu0 0.0
      %448 = vmatprep.subr.mxu0 0.0
      %449 = vmatpush1.msra.mxu0 0.0
      %450 = vmatprep.subr.mxu0 0.0
      %451 = vmatpush1.msra.mxu0 0.0
      %452 = vmatprep.subr.mxu0 0.0
      %453 = vmatpush1.msra.mxu0 0.0
      %454 = vmatprep.subr.mxu0 0.0
      %455 = vmatpush1.msra.mxu0 0.0
      %456 = vmatprep.subr.mxu0 0.0
      %457 = vmatpush1.msra.mxu0 0.0
      %458 = vmatprep.mubr.f32.mxu0 0.0
      %v459 = vand.u32 %v214, 4294901760
      %v460 = vsub.f32 %v214, %v459
      %461 = vmatmul.mubr.f32.gmra.mrb[0].mxu0 %v460
      %v462 = vpop.f32.mrb[0].mxu0
      %v463 = vadd.f32 %v383, %v462
      %v464 = vpop.f32.mrb[0].mxu0
      %465 = vdwg.mxu0
      %466 = vmatprep.subr.mxu0 0.0
      %v467 = vand.u32 %v196, 4294901760
      %468 = vmatpush1.msra.mxu0 %v467
      %469 = vmatprep.subr.mxu0 0.0
      %v470 = vand.u32 %v197, 4294901760
      %471 = vmatpush1.msra.mxu0 %v470
      %472 = vmatprep.subr.mxu0 0.0
      %v473 = vand.u32 %v198, 4294901760
      %474 = vmatpush1.msra.mxu0 %v473
      %475 = vmatprep.subr.mxu0 0.0
      %v476 = vand.u32 %v199, 4294901760
      %477 = vmatpush1.msra.mxu0 %v476
      %478 = vmatprep.subr.mxu0 0.0
      %479 = vmatpush1.msra.mxu0 0.0
      %480 = vmatprep.subr.mxu0 0.0
      %481 = vmatpush1.msra.mxu0 0.0
      %482 = vmatprep.subr.mxu0 0.0
      %483 = vmatpush1.msra.mxu0 0.0
      %484 = vmatprep.subr.mxu0 0.0
      %485 = vmatpush1.msra.mxu0 0.0
      %486 = vmatprep.subr.mxu0 0.0
      %487 = vmatpush1.msra.mxu0 0.0
      %488 = vmatprep.subr.mxu0 0.0
      %489 = vmatpush1.msra.mxu0 0.0
      %490 = vmatprep.subr.mxu0 0.0
      %491 = vmatpush1.msra.mxu0 0.0
      %492 = vmatprep.subr.mxu0 0.0
      %493 = vmatpush1.msra.mxu0 0.0
      %494 = vmatprep.subr.mxu0 0.0
      %495 = vmatpush1.msra.mxu0 0.0
      %496 = vmatprep.subr.mxu0 0.0
      %497 = vmatpush1.msra.mxu0 0.0
      %498 = vmatprep.subr.mxu0 0.0
      %499 = vmatpush1.msra.mxu0 0.0
      %500 = vmatprep.subr.mxu0 0.0
      %501 = vmatpush1.msra.mxu0 0.0
      %502 = vmatprep.subr.mxu0 0.0
      %503 = vmatpush1.msra.mxu0 0.0
      %504 = vmatprep.subr.mxu0 0.0
      %505 = vmatpush1.msra.mxu0 0.0
      %506 = vmatprep.subr.mxu0 0.0
      %507 = vmatpush1.msra.mxu0 0.0
      %508 = vmatprep.subr.mxu0 0.0
      %509 = vmatpush1.msra.mxu0 0.0
      %510 = vmatprep.subr.mxu0 0.0
      %511 = vmatpush1.msra.mxu0 0.0
      %512 = vmatprep.subr.mxu0 0.0
      %513 = vmatpush1.msra.mxu0 0.0
      %514 = vmatprep.subr.mxu0 0.0
      %515 = vmatpush1.msra.mxu0 0.0
      %516 = vmatprep.subr.mxu0 0.0
      %517 = vmatpush1.msra.mxu0 0.0
      %518 = vmatprep.subr.mxu0 0.0
      %519 = vmatpush1.msra.mxu0 0.0
      %520 = vmatprep.subr.mxu0 0.0
      %521 = vmatpush1.msra.mxu0 0.0
      %522 = vmatprep.subr.mxu0 0.0
      %523 = vmatpush1.msra.mxu0 0.0
      %524 = vmatprep.subr.mxu0 0.0
      %525 = vmatpush1.msra.mxu0 0.0
      %526 = vmatprep.subr.mxu0 0.0
      %527 = vmatpush1.msra.mxu0 0.0
      %528 = vmatprep.subr.mxu0 0.0
      %529 = vmatpush1.msra.mxu0 0.0
      %530 = vmatprep.subr.mxu0 0.0
      %531 = vmatpush1.msra.mxu0 0.0
      %532 = vmatprep.subr.mxu0 0.0
      %533 = vmatpush1.msra.mxu0 0.0
      %534 = vmatprep.mubr.f32.mxu0 0.0
      %v535 = vand.u32 %v214, 4294901760
      %v536 = vsub.f32 %v214, %v535
      %v537 = vand.u32 %v536, 4294901760
      %538 = vmatmul.mubr.f32.gmra.mrb[0].mxu0 %v537
      %v539 = vpop.f32.mrb[0].mxu0
      %v540 = vadd.f32 %v463, %v539
      %v541 = vpop.f32.mrb[0].mxu0
      %542 = vdwg.mxu0
      %543 = vmatprep.subr.mxu0 0.0
      %v544 = vand.u32 %v196, 4294901760
      %v545 = vsub.f32 %v196, %v544
      %v546 = vand.u32 %v545, 4294901760
      %547 = vmatpush1.msra.mxu0 %v546
      %548 = vmatprep.subr.mxu0 0.0
      %v549 = vand.u32 %v197, 4294901760
      %v550 = vsub.f32 %v197, %v549
      %v551 = vand.u32 %v550, 4294901760
      %552 = vmatpush1.msra.mxu0 %v551
      %553 = vmatprep.subr.mxu0 0.0
      %v554 = vand.u32 %v198, 4294901760
      %v555 = vsub.f32 %v198, %v554
      %v556 = vand.u32 %v555, 4294901760
      %557 = vmatpush1.msra.mxu0 %v556
      %558 = vmatprep.subr.mxu0 0.0
      %v559 = vand.u32 %v199, 4294901760
      %v560 = vsub.f32 %v199, %v559
      %v561 = vand.u32 %v560, 4294901760
      %562 = vmatpush1.msra.mxu0 %v561
      %563 = vmatprep.subr.mxu0 0.0
      %564 = vmatpush1.msra.mxu0 0.0
      %565 = vmatprep.subr.mxu0 0.0
      %566 = vmatpush1.msra.mxu0 0.0
      %567 = vmatprep.subr.mxu0 0.0
      %568 = vmatpush1.msra.mxu0 0.0
      %569 = vmatprep.subr.mxu0 0.0
      %570 = vmatpush1.msra.mxu0 0.0
      %571 = vmatprep.subr.mxu0 0.0
      %572 = vmatpush1.msra.mxu0 0.0
      %573 = vmatprep.subr.mxu0 0.0
      %574 = vmatpush1.msra.mxu0 0.0
      %575 = vmatprep.subr.mxu0 0.0
      %576 = vmatpush1.msra.mxu0 0.0
      %577 = vmatprep.subr.mxu0 0.0
      %578 = vmatpush1.msra.mxu0 0.0
      %579 = vmatprep.subr.mxu0 0.0
      %580 = vmatpush1.msra.mxu0 0.0
      %581 = vmatprep.subr.mxu0 0.0
      %582 = vmatpush1.msra.mxu0 0.0
      %583 = vmatprep.subr.mxu0 0.0
      %584 = vmatpush1.msra.mxu0 0.0
      %585 = vmatprep.subr.mxu0 0.0
      %586 = vmatpush1.msra.mxu0 0.0
      %587 = vmatprep.subr.mxu0 0.0
      %588 = vmatpush1.msra.mxu0 0.0
      %589 = vmatprep.subr.mxu0 0.0
      %590 = vmatpush1.msra.mxu0 0.0
      %591 = vmatprep.subr.mxu0 0.0
      %592 = vmatpush1.msra.mxu0 0.0
      %593 = vmatprep.subr.mxu0 0.0
      %594 = vmatpush1.msra.mxu0 0.0
      %595 = vmatprep.subr.mxu0 0.0
      %596 = vmatpush1.msra.mxu0 0.0
      %597 = vmatprep.subr.mxu0 0.0
      %598 = vmatpush1.msra.mxu0 0.0
      %599 = vmatprep.subr.mxu0 0.0
      %600 = vmatpush1.msra.mxu0 0.0
      %601 = vmatprep.subr.mxu0 0.0
      %602 = vmatpush1.msra.mxu0 0.0
      %603 = vmatprep.subr.mxu0 0.0
      %604 = vmatpush1.msra.mxu0 0.0
      %605 = vmatprep.subr.mxu0 0.0
      %606 = vmatpush1.msra.mxu0 0.0
      %607 = vmatprep.subr.mxu0 0.0
      %608 = vmatpush1.msra.mxu0 0.0
      %609 = vmatprep.subr.mxu0 0.0
      %610 = vmatpush1.msra.mxu0 0.0
      %611 = vmatprep.subr.mxu0 0.0
      %612 = vmatpush1.msra.mxu0 0.0
      %613 = vmatprep.subr.mxu0 0.0
      %614 = vmatpush1.msra.mxu0 0.0
      %615 = vmatprep.subr.mxu0 0.0
      %616 = vmatpush1.msra.mxu0 0.0
      %617 = vmatprep.subr.mxu0 0.0
      %618 = vmatpush1.msra.mxu0 0.0
      %619 = vmatprep.mubr.f32.mxu0 0.0
      %v620 = vand.u32 %v214, 4294901760
      %621 = vmatmul.mubr.f32.gmra.mrb[0].mxu0 %v620
      %v622 = vpop.f32.mrb[0].mxu0
      %v623 = vadd.f32 %v540, %v622
      %v624 = vpop.f32.mrb[0].mxu0
      %625 = vdwg.mxu0
      %626 = vmatprep.subr.mxu0 0.0
      %v627 = vand.u32 %v196, 4294901760
      %628 = vmatpush1.msra.mxu0 %v627
      %629 = vmatprep.subr.mxu0 0.0
      %v630 = vand.u32 %v197, 4294901760
      %631 = vmatpush1.msra.mxu0 %v630
      %632 = vmatprep.subr.mxu0 0.0
      %v633 = vand.u32 %v198, 4294901760
      %634 = vmatpush1.msra.mxu0 %v633
      %635 = vmatprep.subr.mxu0 0.0
      %v636 = vand.u32 %v199, 4294901760
      %637 = vmatpush1.msra.mxu0 %v636
      %638 = vmatprep.subr.mxu0 0.0
      %639 = vmatpush1.msra.mxu0 0.0
      %640 = vmatprep.subr.mxu0 0.0
      %641 = vmatpush1.msra.mxu0 0.0
      %642 = vmatprep.subr.mxu0 0.0
      %643 = vmatpush1.msra.mxu0 0.0
      %644 = vmatprep.subr.mxu0 0.0
      %645 = vmatpush1.msra.mxu0 0.0
      %646 = vmatprep.subr.mxu0 0.0
      %647 = vmatpush1.msra.mxu0 0.0
      %648 = vmatprep.subr.mxu0 0.0
      %649 = vmatpush1.msra.mxu0 0.0
      %650 = vmatprep.subr.mxu0 0.0
      %651 = vmatpush1.msra.mxu0 0.0
      %652 = vmatprep.subr.mxu0 0.0
      %653 = vmatpush1.msra.mxu0 0.0
      %654 = vmatprep.subr.mxu0 0.0
      %655 = vmatpush1.msra.mxu0 0.0
      %656 = vmatprep.subr.mxu0 0.0
      %657 = vmatpush1.msra.mxu0 0.0
      %658 = vmatprep.subr.mxu0 0.0
      %659 = vmatpush1.msra.mxu0 0.0
      %660 = vmatprep.subr.mxu0 0.0
      %661 = vmatpush1.msra.mxu0 0.0
      %662 = vmatprep.subr.mxu0 0.0
      %663 = vmatpush1.msra.mxu0 0.0
      %664 = vmatprep.subr.mxu0 0.0
      %665 = vmatpush1.msra.mxu0 0.0
      %666 = vmatprep.subr.mxu0 0.0
      %667 = vmatpush1.msra.mxu0 0.0
      %668 = vmatprep.subr.mxu0 0.0
      %669 = vmatpush1.msra.mxu0 0.0
      %670 = vmatprep.subr.mxu0 0.0
      %671 = vmatpush1.msra.mxu0 0.0
      %672 = vmatprep.subr.mxu0 0.0
      %673 = vmatpush1.msra.mxu0 0.0
      %674 = vmatprep.subr.mxu0 0.0
      %675 = vmatpush1.msra.mxu0 0.0
      %676 = vmatprep.subr.mxu0 0.0
      %677 = vmatpush1.msra.mxu0 0.0
      %678 = vmatprep.subr.mxu0 0.0
      %679 = vmatpush1.msra.mxu0 0.0
      %680 = vmatprep.subr.mxu0 0.0
      %681 = vmatpush1.msra.mxu0 0.0
      %682 = vmatprep.subr.mxu0 0.0
      %683 = vmatpush1.msra.mxu0 0.0
      %684 = vmatprep.subr.mxu0 0.0
      %685 = vmatpush1.msra.mxu0 0.0
      %686 = vmatprep.subr.mxu0 0.0
      %687 = vmatpush1.msra.mxu0 0.0
      %688 = vmatprep.subr.mxu0 0.0
      %689 = vmatpush1.msra.mxu0 0.0
      %690 = vmatprep.subr.mxu0 0.0
      %691 = vmatpush1.msra.mxu0 0.0
      %692 = vmatprep.subr.mxu0 0.0
      %693 = vmatpush1.msra.mxu0 0.0
      %694 = vmatprep.mubr.f32.mxu0 0.0
      %v695 = vand.u32 %v214, 4294901760
      %696 = vmatmul.mubr.f32.gmra.mrb[0].mxu0 %v695
      %v697 = vpop.f32.mrb[0].mxu0
      %v698 = vadd.f32 %v623, %v697
      %v699 = vpop.f32.mrb[0].mxu0
      %700 = vdwg.mxu0
      %v701 = vmax.f32 %v698, 0.0
      %702 = vmatprep.subr.mxu0 0.0
      %v703 = vand.u32 %v202, 4294901760
      %704 = vmatpush1.msra.mxu0 %v703
      %705 = vmatprep.subr.mxu0 0.0
      %v706 = vand.u32 %v205, 4294901760
      %707 = vmatpush1.msra.mxu0 %v706
      %708 = vmatprep.subr.mxu0 0.0
      %v709 = vand.u32 %v208, 4294901760
      %710 = vmatpush1.msra.mxu0 %v709
      %711 = vmatprep.subr.mxu0 0.0
      %v712 = vand.u32 %v211, 4294901760
      %713 = vmatpush1.msra.mxu0 %v712
      %714 = vmatprep.subr.mxu0 0.0
      %715 = vmatpush1.msra.mxu0 0.0
      %716 = vmatprep.subr.mxu0 0.0
      %717 = vmatpush1.msra.mxu0 0.0
      %718 = vmatprep.subr.mxu0 0.0
      %719 = vmatpush1.msra.mxu0 0.0
      %720 = vmatprep.subr.mxu0 0.0
      %721 = vmatpush1.msra.mxu0 0.0
      %722 = vmatprep.subr.mxu0 0.0
      %723 = vmatpush1.msra.mxu0 0.0
      %724 = vmatprep.subr.mxu0 0.0
      %725 = vmatpush1.msra.mxu0 0.0
      %726 = vmatprep.subr.mxu0 0.0
      %727 = vmatpush1.msra.mxu0 0.0
      %728 = vmatprep.subr.mxu0 0.0
      %729 = vmatpush1.msra.mxu0 0.0
      %730 = vmatprep.subr.mxu0 0.0
      %731 = vmatpush1.msra.mxu0 0.0
      %732 = vmatprep.subr.mxu0 0.0
      %733 = vmatpush1.msra.mxu0 0.0
      %734 = vmatprep.subr.mxu0 0.0
      %735 = vmatpush1.msra.mxu0 0.0
      %736 = vmatprep.subr.mxu0 0.0
      %737 = vmatpush1.msra.mxu0 0.0
      %738 = vmatprep.subr.mxu0 0.0
      %739 = vmatpush1.msra.mxu0 0.0
      %740 = vmatprep.subr.mxu0 0.0
      %741 = vmatpush1.msra.mxu0 0.0
      %742 = vmatprep.subr.mxu0 0.0
      %743 = vmatpush1.msra.mxu0 0.0
      %744 = vmatprep.subr.mxu0 0.0
      %745 = vmatpush1.msra.mxu0 0.0
      %746 = vmatprep.subr.mxu0 0.0
      %747 = vmatpush1.msra.mxu0 0.0
      %748 = vmatprep.subr.mxu0 0.0
      %749 = vmatpush1.msra.mxu0 0.0
      %750 = vmatprep.subr.mxu0 0.0
      %751 = vmatpush1.msra.mxu0 0.0
      %752 = vmatprep.subr.mxu0 0.0
      %753 = vmatpush1.msra.mxu0 0.0
      %754 = vmatprep.subr.mxu0 0.0
      %755 = vmatpush1.msra.mxu0 0.0
      %756 = vmatprep.subr.mxu0 0.0
      %757 = vmatpush1.msra.mxu0 0.0
      %758 = vmatprep.subr.mxu0 0.0
      %759 = vmatpush1.msra.mxu0 0.0
      %760 = vmatprep.subr.mxu0 0.0
      %761 = vmatpush1.msra.mxu0 0.0
      %762 = vmatprep.subr.mxu0 0.0
      %763 = vmatpush1.msra.mxu0 0.0
      %764 = vmatprep.subr.mxu0 0.0
      %765 = vmatpush1.msra.mxu0 0.0
      %766 = vmatprep.subr.mxu0 0.0
      %767 = vmatpush1.msra.mxu0 0.0
      %768 = vmatprep.subr.mxu0 0.0
      %769 = vmatpush1.msra.mxu0 0.0
      %770 = vmatprep.mubr.f32.mxu0 0.0
      %v771 = vand.u32 %v214, 4294901760
      %v772 = vsub.f32 %v214, %v771
      %v773 = vand.u32 %v772, 4294901760
      %v774 = vsub.f32 %v772, %v773
      %v775 = vand.u32 %v774, 4294901760
      %776 = vmatmul.mubr.f32.gmra.mrb[0].mxu0 %v775
      %v777 = vpop.f32.mrb[0].mxu0
      %v778 = vadd.f32 0.0, %v777
      %v779 = vpop.f32.mrb[0].mxu0
      %780 = vdwg.mxu0
      %781 = vmatprep.subr.mxu0 0.0
      %v782 = vand.u32 %v202, 4294901760
      %v783 = vsub.f32 %v202, %v782
      %v784 = vand.u32 %v783, 4294901760
      %v785 = vsub.f32 %v783, %v784
      %v786 = vand.u32 %v785, 4294901760
      %787 = vmatpush1.msra.mxu0 %v786
      %788 = vmatprep.subr.mxu0 0.0
      %v789 = vand.u32 %v205, 4294901760
      %v790 = vsub.f32 %v205, %v789
      %v791 = vand.u32 %v790, 4294901760
      %v792 = vsub.f32 %v790, %v791
      %v793 = vand.u32 %v792, 4294901760
      %794 = vmatpush1.msra.mxu0 %v793
      %795 = vmatprep.subr.mxu0 0.0
      %v796 = vand.u32 %v208, 4294901760
      %v797 = vsub.f32 %v208, %v796
      %v798 = vand.u32 %v797, 4294901760
      %v799 = vsub.f32 %v797, %v798
      %v800 = vand.u32 %v799, 4294901760
      %801 = vmatpush1.msra.mxu0 %v800
      %802 = vmatprep.subr.mxu0 0.0
      %v803 = vand.u32 %v211, 4294901760
      %v804 = vsub.f32 %v211, %v803
      %v805 = vand.u32 %v804, 4294901760
      %v806 = vsub.f32 %v804, %v805
      %v807 = vand.u32 %v806, 4294901760
      %808 = vmatpush1.msra.mxu0 %v807
      %809 = vmatprep.subr.mxu0 0.0
      %810 = vmatpush1.msra.mxu0 0.0
      %811 = vmatprep.subr.mxu0 0.0
      %812 = vmatpush1.msra.mxu0 0.0
      %813 = vmatprep.subr.mxu0 0.0
      %814 = vmatpush1.msra.mxu0 0.0
      %815 = vmatprep.subr.mxu0 0.0
      %816 = vmatpush1.msra.mxu0 0.0
      %817 = vmatprep.subr.mxu0 0.0
      %818 = vmatpush1.msra.mxu0 0.0
      %819 = vmatprep.subr.mxu0 0.0
      %820 = vmatpush1.msra.mxu0 0.0
      %821 = vmatprep.subr.mxu0 0.0
      %822 = vmatpush1.msra.mxu0 0.0
      %823 = vmatprep.subr.mxu0 0.0
      %824 = vmatpush1.msra.mxu0 0.0
      %825 = vmatprep.subr.mxu0 0.0
      %826 = vmatpush1.msra.mxu0 0.0
      %827 = vmatprep.subr.mxu0 0.0
      %828 = vmatpush1.msra.mxu0 0.0
      %829 = vmatprep.subr.mxu0 0.0
      %830 = vmatpush1.msra.mxu0 0.0
      %831 = vmatprep.subr.mxu0 0.0
      %832 = vmatpush1.msra.mxu0 0.0
      %833 = vmatprep.subr.mxu0 0.0
      %834 = vmatpush1.msra.mxu0 0.0
      %835 = vmatprep.subr.mxu0 0.0
      %836 = vmatpush1.msra.mxu0 0.0
      %837 = vmatprep.subr.mxu0 0.0
      %838 = vmatpush1.msra.mxu0 0.0
      %839 = vmatprep.subr.mxu0 0.0
      %840 = vmatpush1.msra.mxu0 0.0
      %841 = vmatprep.subr.mxu0 0.0
      %842 = vmatpush1.msra.mxu0 0.0
      %843 = vmatprep.subr.mxu0 0.0
      %844 = vmatpush1.msra.mxu0 0.0
      %845 = vmatprep.subr.mxu0 0.0
      %846 = vmatpush1.msra.mxu0 0.0
      %847 = vmatprep.subr.mxu0 0.0
      %848 = vmatpush1.msra.mxu0 0.0
      %849 = vmatprep.subr.mxu0 0.0
      %850 = vmatpush1.msra.mxu0 0.0
      %851 = vmatprep.subr.mxu0 0.0
      %852 = vmatpush1.msra.mxu0 0.0
      %853 = vmatprep.subr.mxu0 0.0
      %854 = vmatpush1.msra.mxu0 0.0
      %855 = vmatprep.subr.mxu0 0.0
      %856 = vmatpush1.msra.mxu0 0.0
      %857 = vmatprep.subr.mxu0 0.0
      %858 = vmatpush1.msra.mxu0 0.0
      %859 = vmatprep.subr.mxu0 0.0
      %860 = vmatpush1.msra.mxu0 0.0
      %861 = vmatprep.subr.mxu0 0.0
      %862 = vmatpush1.msra.mxu0 0.0
      %863 = vmatprep.subr.mxu0 0.0
      %864 = vmatpush1.msra.mxu0 0.0
      %865 = vmatprep.mubr.f32.mxu0 0.0
      %v866 = vand.u32 %v214, 4294901760
      %867 = vmatmul.mubr.f32.gmra.mrb[0].mxu0 %v866
      %v868 = vpop.f32.mrb[0].mxu0
      %v869 = vadd.f32 %v778, %v868
      %v870 = vpop.f32.mrb[0].mxu0
      %871 = vdwg.mxu0
      %872 = vmatprep.subr.mxu0 0.0
      %v873 = vand.u32 %v202, 4294901760
      %v874 = vsub.f32 %v202, %v873
      %875 = vmatpush1.msra.mxu0 %v874
      %876 = vmatprep.subr.mxu0 0.0
      %v877 = vand.u32 %v205, 4294901760
      %v878 = vsub.f32 %v205, %v877
      %879 = vmatpush1.msra.mxu0 %v878
      %880 = vmatprep.subr.mxu0 0.0
      %v881 = vand.u32 %v208, 4294901760
      %v882 = vsub.f32 %v208, %v881
      %883 = vmatpush1.msra.mxu0 %v882
      %884 = vmatprep.subr.mxu0 0.0
      %v885 = vand.u32 %v211, 4294901760
      %v886 = vsub.f32 %v211, %v885
      %887 = vmatpush1.msra.mxu0 %v886
      %888 = vmatprep.subr.mxu0 0.0
      %889 = vmatpush1.msra.mxu0 0.0
      %890 = vmatprep.subr.mxu0 0.0
      %891 = vmatpush1.msra.mxu0 0.0
      %892 = vmatprep.subr.mxu0 0.0
      %893 = vmatpush1.msra.mxu0 0.0
      %894 = vmatprep.subr.mxu0 0.0
      %895 = vmatpush1.msra.mxu0 0.0
      %896 = vmatprep.subr.mxu0 0.0
      %897 = vmatpush1.msra.mxu0 0.0
      %898 = vmatprep.subr.mxu0 0.0
      %899 = vmatpush1.msra.mxu0 0.0
      %900 = vmatprep.subr.mxu0 0.0
      %901 = vmatpush1.msra.mxu0 0.0
      %902 = vmatprep.subr.mxu0 0.0
      %903 = vmatpush1.msra.mxu0 0.0
      %904 = vmatprep.subr.mxu0 0.0
      %905 = vmatpush1.msra.mxu0 0.0
      %906 = vmatprep.subr.mxu0 0.0
      %907 = vmatpush1.msra.mxu0 0.0
      %908 = vmatprep.subr.mxu0 0.0
      %909 = vmatpush1.msra.mxu0 0.0
      %910 = vmatprep.subr.mxu0 0.0
      %911 = vmatpush1.msra.mxu0 0.0
      %912 = vmatprep.subr.mxu0 0.0
      %913 = vmatpush1.msra.mxu0 0.0
      %914 = vmatprep.subr.mxu0 0.0
      %915 = vmatpush1.msra.mxu0 0.0
      %916 = vmatprep.subr.mxu0 0.0
      %917 = vmatpush1.msra.mxu0 0.0
      %918 = vmatprep.subr.mxu0 0.0
      %919 = vmatpush1.msra.mxu0 0.0
      %920 = vmatprep.subr.mxu0 0.0
      %921 = vmatpush1.msra.mxu0 0.0
      %922 = vmatprep.subr.mxu0 0.0
      %923 = vmatpush1.msra.mxu0 0.0
      %924 = vmatprep.subr.mxu0 0.0
      %925 = vmatpush1.msra.mxu0 0.0
      %926 = vmatprep.subr.mxu0 0.0
      %927 = vmatpush1.msra.mxu0 0.0
      %928 = vmatprep.subr.mxu0 0.0
      %929 = vmatpush1.msra.mxu0 0.0
      %930 = vmatprep.subr.mxu0 0.0
      %931 = vmatpush1.msra.mxu0 0.0
      %932 = vmatprep.subr.mxu0 0.0
      %933 = vmatpush1.msra.mxu0 0.0
      %934 = vmatprep.subr.mxu0 0.0
      %935 = vmatpush1.msra.mxu0 0.0
      %936 = vmatprep.subr.mxu0 0.0
      %937 = vmatpush1.msra.mxu0 0.0
      %938 = vmatprep.subr.mxu0 0.0
      %939 = vmatpush1.msra.mxu0 0.0
      %940 = vmatprep.subr.mxu0 0.0
      %941 = vmatpush1.msra.mxu0 0.0
      %942 = vmatprep.subr.mxu0 0.0
      %943 = vmatpush1.msra.mxu0 0.0
      %944 = vmatprep.mubr.f32.mxu0 0.0
      %v945 = vand.u32 %v214, 4294901760
      %v946 = vsub.f32 %v214, %v945
      %947 = vmatmul.mubr.f32.gmra.mrb[0].mxu0 %v946
      %v948 = vpop.f32.mrb[0].mxu0
      %v949 = vadd.f32 %v869, %v948
      %v950 = vpop.f32.mrb[0].mxu0
      %951 = vdwg.mxu0
      %952 = vmatprep.subr.mxu0 0.0
      %v953 = vand.u32 %v202, 4294901760
      %954 = vmatpush1.msra.mxu0 %v953
      %955 = vmatprep.subr.mxu0 0.0
      %v956 = vand.u32 %v205, 4294901760
      %957 = vmatpush1.msra.mxu0 %v956
      %958 = vmatprep.subr.mxu0 0.0
      %v959 = vand.u32 %v208, 4294901760
      %960 = vmatpush1.msra.mxu0 %v959
      %961 = vmatprep.subr.mxu0 0.0
      %v962 = vand.u32 %v211, 4294901760
      %963 = vmatpush1.msra.mxu0 %v962
      %964 = vmatprep.subr.mxu0 0.0
      %965 = vmatpush1.msra.mxu0 0.0
      %966 = vmatprep.subr.mxu0 0.0
      %967 = vmatpush1.msra.mxu0 0.0
      %968 = vmatprep.subr.mxu0 0.0
      %969 = vmatpush1.msra.mxu0 0.0
      %970 = vmatprep.subr.mxu0 0.0
      %971 = vmatpush1.msra.mxu0 0.0
      %972 = vmatprep.subr.mxu0 0.0
      %973 = vmatpush1.msra.mxu0 0.0
      %974 = vmatprep.subr.mxu0 0.0
      %975 = vmatpush1.msra.mxu0 0.0
      %976 = vmatprep.subr.mxu0 0.0
      %977 = vmatpush1.msra.mxu0 0.0
      %978 = vmatprep.subr.mxu0 0.0
      %979 = vmatpush1.msra.mxu0 0.0
      %980 = vmatprep.subr.mxu0 0.0
      %981 = vmatpush1.msra.mxu0 0.0
      %982 = vmatprep.subr.mxu0 0.0
      %983 = vmatpush1.msra.mxu0 0.0
      %984 = vmatprep.subr.mxu0 0.0
      %985 = vmatpush1.msra.mxu0 0.0
      %986 = vmatprep.subr.mxu0 0.0
      %987 = vmatpush1.msra.mxu0 0.0
      %988 = vmatprep.subr.mxu0 0.0
      %989 = vmatpush1.msra.mxu0 0.0
      %990 = vmatprep.subr.mxu0 0.0
      %991 = vmatpush1.msra.mxu0 0.0
      %992 = vmatprep.subr.mxu0 0.0
      %993 = vmatpush1.msra.mxu0 0.0
      %994 = vmatprep.subr.mxu0 0.0
      %995 = vmatpush1.msra.mxu0 0.0
      %996 = vmatprep.subr.mxu0 0.0
      %997 = vmatpush1.msra.mxu0 0.0
      %998 = vmatprep.subr.mxu0 0.0
      %999 = vmatpush1.msra.mxu0 0.0
      %1000 = vmatprep.subr.mxu0 0.0
      %1001 = vmatpush1.msra.mxu0 0.0
      %1002 = vmatprep.subr.mxu0 0.0
      %1003 = vmatpush1.msra.mxu0 0.0
      %1004 = vmatprep.subr.mxu0 0.0
      %1005 = vmatpush1.msra.mxu0 0.0
      %1006 = vmatprep.subr.mxu0 0.0
      %1007 = vmatpush1.msra.mxu0 0.0
      %1008 = vmatprep.subr.mxu0 0.0
      %1009 = vmatpush1.msra.mxu0 0.0
      %1010 = vmatprep.subr.mxu0 0.0
      %1011 = vmatpush1.msra.mxu0 0.0
      %1012 = vmatprep.subr.mxu0 0.0
      %1013 = vmatpush1.msra.mxu0 0.0
      %1014 = vmatprep.subr.mxu0 0.0
      %1015 = vmatpush1.msra.mxu0 0.0
      %1016 = vmatprep.subr.mxu0 0.0
      %1017 = vmatpush1.msra.mxu0 0.0
      %1018 = vmatprep.subr.mxu0 0.0
      %1019 = vmatpush1.msra.mxu0 0.0
      %1020 = vmatprep.mubr.f32.mxu0 0.0
      %v1021 = vand.u32 %v214, 4294901760
      %v1022 = vsub.f32 %v214, %v1021
      %v1023 = vand.u32 %v1022, 4294901760
      %1024 = vmatmul.mubr.f32.gmra.mrb[0].mxu0 %v1023
      %v1025 = vpop.f32.mrb[0].mxu0
      %v1026 = vadd.f32 %v949, %v1025
      %v1027 = vpop.f32.mrb[0].mxu0
      %1028 = vdwg.mxu0
      %1029 = vmatprep.subr.mxu0 0.0
      %v1030 = vand.u32 %v202, 4294901760
      %v1031 = vsub.f32 %v202, %v1030
      %v1032 = vand.u32 %v1031, 4294901760
      %1033 = vmatpush1.msra.mxu0 %v1032
      %1034 = vmatprep.subr.mxu0 0.0
      %v1035 = vand.u32 %v205, 4294901760
      %v1036 = vsub.f32 %v205, %v1035
      %v1037 = vand.u32 %v1036, 4294901760
      %1038 = vmatpush1.msra.mxu0 %v1037
      %1039 = vmatprep.subr.mxu0 0.0
      %v1040 = vand.u32 %v208, 4294901760
      %v1041 = vsub.f32 %v208, %v1040
      %v1042 = vand.u32 %v1041, 4294901760
      %1043 = vmatpush1.msra.mxu0 %v1042
      %1044 = vmatprep.subr.mxu0 0.0
      %v1045 = vand.u32 %v211, 4294901760
      %v1046 = vsub.f32 %v211, %v1045
      %v1047 = vand.u32 %v1046, 4294901760
      %1048 = vmatpush1.msra.mxu0 %v1047
      %1049 = vmatprep.subr.mxu0 0.0
      %1050 = vmatpush1.msra.mxu0 0.0
      %1051 = vmatprep.subr.mxu0 0.0
      %1052 = vmatpush1.msra.mxu0 0.0
      %1053 = vmatprep.subr.mxu0 0.0
      %1054 = vmatpush1.msra.mxu0 0.0
      %1055 = vmatprep.subr.mxu0 0.0
      %1056 = vmatpush1.msra.mxu0 0.0
      %1057 = vmatprep.subr.mxu0 0.0
      %1058 = vmatpush1.msra.mxu0 0.0
      %1059 = vmatprep.subr.mxu0 0.0
      %1060 = vmatpush1.msra.mxu0 0.0
      %1061 = vmatprep.subr.mxu0 0.0
      %1062 = vmatpush1.msra.mxu0 0.0
      %1063 = vmatprep.subr.mxu0 0.0
      %1064 = vmatpush1.msra.mxu0 0.0
      %1065 = vmatprep.subr.mxu0 0.0
      %1066 = vmatpush1.msra.mxu0 0.0
      %1067 = vmatprep.subr.mxu0 0.0
      %1068 = vmatpush1.msra.mxu0 0.0
      %1069 = vmatprep.subr.mxu0 0.0
      %1070 = vmatpush1.msra.mxu0 0.0
      %1071 = vmatprep.subr.mxu0 0.0
      %1072 = vmatpush1.msra.mxu0 0.0
      %1073 = vmatprep.subr.mxu0 0.0
      %1074 = vmatpush1.msra.mxu0 0.0
      %1075 = vmatprep.subr.mxu0 0.0
      %1076 = vmatpush1.msra.mxu0 0.0
      %1077 = vmatprep.subr.mxu0 0.0
      %1078 = vmatpush1.msra.mxu0 0.0
      %1079 = vmatprep.subr.mxu0 0.0
      %1080 = vmatpush1.msra.mxu0 0.0
      %1081 = vmatprep.subr.mxu0 0.0
      %1082 = vmatpush1.msra.mxu0 0.0
      %1083 = vmatprep.subr.mxu0 0.0
      %1084 = vmatpush1.msra.mxu0 0.0
      %1085 = vmatprep.subr.mxu0 0.0
      %1086 = vmatpush1.msra.mxu0 0.0
      %1087 = vmatprep.subr.mxu0 0.0
      %1088 = vmatpush1.msra.mxu0 0.0
      %1089 = vmatprep.subr.mxu0 0.0
      %1090 = vmatpush1.msra.mxu0 0.0
      %1091 = vmatprep.subr.mxu0 0.0
      %1092 = vmatpush1.msra.mxu0 0.0
      %1093 = vmatprep.subr.mxu0 0.0
      %1094 = vmatpush1.msra.mxu0 0.0
      %1095 = vmatprep.subr.mxu0 0.0
      %1096 = vmatpush1.msra.mxu0 0.0
      %1097 = vmatprep.subr.mxu0 0.0
      %1098 = vmatpush1.msra.mxu0 0.0
      %1099 = vmatprep.subr.mxu0 0.0
      %1100 = vmatpush1.msra.mxu0 0.0
      %1101 = vmatprep.subr.mxu0 0.0
      %1102 = vmatpush1.msra.mxu0 0.0
      %1103 = vmatprep.subr.mxu0 0.0
      %1104 = vmatpush1.msra.mxu0 0.0
      %1105 = vmatprep.mubr.f32.mxu0 0.0
      %v1106 = vand.u32 %v214, 4294901760
      %1107 = vmatmul.mubr.f32.gmra.mrb[0].mxu0 %v1106
      %v1108 = vpop.f32.mrb[0].mxu0
      %v1109 = vadd.f32 %v1026, %v1108
      %v1110 = vpop.f32.mrb[0].mxu0
      %1111 = vdwg.mxu0
      %1112 = vmatprep.subr.mxu0 0.0
      %v1113 = vand.u32 %v202, 4294901760
      %1114 = vmatpush1.msra.mxu0 %v1113
      %1115 = vmatprep.subr.mxu0 0.0
      %v1116 = vand.u32 %v205, 4294901760
      %1117 = vmatpush1.msra.mxu0 %v1116
      %1118 = vmatprep.subr.mxu0 0.0
      %v1119 = vand.u32 %v208, 4294901760
      %1120 = vmatpush1.msra.mxu0 %v1119
      %1121 = vmatprep.subr.mxu0 0.0
      %v1122 = vand.u32 %v211, 4294901760
      %1123 = vmatpush1.msra.mxu0 %v1122
      %1124 = vmatprep.subr.mxu0 0.0
      %1125 = vmatpush1.msra.mxu0 0.0
      %1126 = vmatprep.subr.mxu0 0.0
      %1127 = vmatpush1.msra.mxu0 0.0
      %1128 = vmatprep.subr.mxu0 0.0
      %1129 = vmatpush1.msra.mxu0 0.0
      %1130 = vmatprep.subr.mxu0 0.0
      %1131 = vmatpush1.msra.mxu0 0.0
      %1132 = vmatprep.subr.mxu0 0.0
      %1133 = vmatpush1.msra.mxu0 0.0
      %1134 = vmatprep.subr.mxu0 0.0
      %1135 = vmatpush1.msra.mxu0 0.0
      %1136 = vmatprep.subr.mxu0 0.0
      %1137 = vmatpush1.msra.mxu0 0.0
      %1138 = vmatprep.subr.mxu0 0.0
      %1139 = vmatpush1.msra.mxu0 0.0
      %1140 = vmatprep.subr.mxu0 0.0
      %1141 = vmatpush1.msra.mxu0 0.0
      %1142 = vmatprep.subr.mxu0 0.0
      %1143 = vmatpush1.msra.mxu0 0.0
      %1144 = vmatprep.subr.mxu0 0.0
      %1145 = vmatpush1.msra.mxu0 0.0
      %1146 = vmatprep.subr.mxu0 0.0
      %1147 = vmatpush1.msra.mxu0 0.0
      %1148 = vmatprep.subr.mxu0 0.0
      %1149 = vmatpush1.msra.mxu0 0.0
      %1150 = vmatprep.subr.mxu0 0.0
      %1151 = vmatpush1.msra.mxu0 0.0
      %1152 = vmatprep.subr.mxu0 0.0
      %1153 = vmatpush1.msra.mxu0 0.0
      %1154 = vmatprep.subr.mxu0 0.0
      %1155 = vmatpush1.msra.mxu0 0.0
      %1156 = vmatprep.subr.mxu0 0.0
      %1157 = vmatpush1.msra.mxu0 0.0
      %1158 = vmatprep.subr.mxu0 0.0
      %1159 = vmatpush1.msra.mxu0 0.0
      %1160 = vmatprep.subr.mxu0 0.0
      %1161 = vmatpush1.msra.mxu0 0.0
      %1162 = vmatprep.subr.mxu0 0.0
      %1163 = vmatpush1.msra.mxu0 0.0
      %1164 = vmatprep.subr.mxu0 0.0
      %1165 = vmatpush1.msra.mxu0 0.0
      %1166 = vmatprep.subr.mxu0 0.0
      %1167 = vmatpush1.msra.mxu0 0.0
      %1168 = vmatprep.subr.mxu0 0.0
      %1169 = vmatpush1.msra.mxu0 0.0
      %1170 = vmatprep.subr.mxu0 0.0
      %1171 = vmatpush1.msra.mxu0 0.0
      %1172 = vmatprep.subr.mxu0 0.0
      %1173 = vmatpush1.msra.mxu0 0.0
      %1174 = vmatprep.subr.mxu0 0.0
      %1175 = vmatpush1.msra.mxu0 0.0
      %1176 = vmatprep.subr.mxu0 0.0
      %1177 = vmatpush1.msra.mxu0 0.0
      %1178 = vmatprep.subr.mxu0 0.0
      %1179 = vmatpush1.msra.mxu0 0.0
      %1180 = vmatprep.mubr.f32.mxu0 0.0
      %v1181 = vand.u32 %v214, 4294901760
      %1182 = vmatmul.mubr.f32.gmra.mrb[0].mxu0 %v1181
      %v1183 = vpop.f32.mrb[0].mxu0
      %v1184 = vadd.f32 %v1109, %v1183
      %v1185 = vpop.f32.mrb[0].mxu0
      %1186 = vdwg.mxu0
      %v1187 = vmax.f32 %v1184, 0.0
      %vm1188 = vcmask 15360
      %v1190 = vsel %vm1188, %v172, 0
      %v1193 = vsel %vm1188, %v173, 0
      %v1196 = vsel %vm1188, %v174, 0
      %v1199 = vsel %vm1188, %v175, 0
      %vm1201 = vcmask 1041408
      %v1203 = vsel %vm1201, %v1187, 0
      %1205 = vmatprep.subr.mxu0 0.0
      %v1206 = vand.u32 %v1203, 4294901760
      %1207 = vmatpush1.msra.mxu0 %v1206
      %1208 = vmatprep.subr.mxu0 0.0
      %1209 = vmatpush1.msra.mxu0 0.0
      %1210 = vmatprep.subr.mxu0 0.0
      %1211 = vmatpush1.msra.mxu0 0.0
      %1212 = vmatprep.subr.mxu0 0.0
      %1213 = vmatpush1.msra.mxu0 0.0
      %1214 = vmatprep.subr.mxu0 0.0
      %1215 = vmatpush1.msra.mxu0 0.0
      %1216 = vmatprep.subr.mxu0 0.0
      %1217 = vmatpush1.msra.mxu0 0.0
      %1218 = vmatprep.subr.mxu0 0.0
      %1219 = vmatpush1.msra.mxu0 0.0
      %1220 = vmatprep.subr.mxu0 0.0
      %1221 = vmatpush1.msra.mxu0 0.0
      %1222 = vmatprep.subr.mxu0 0.0
      %1223 = vmatpush1.msra.mxu0 0.0
      %1224 = vmatprep.subr.mxu0 0.0
      %1225 = vmatpush1.msra.mxu0 0.0
      %1226 = vmatprep.subr.mxu0 0.0
      %1227 = vmatpush1.msra.mxu0 0.0
      %1228 = vmatprep.subr.mxu0 0.0
      %1229 = vmatpush1.msra.mxu0 0.0
      %1230 = vmatprep.subr.mxu0 0.0
      %1231 = vmatpush1.msra.mxu0 0.0
      %1232 = vmatprep.subr.mxu0 0.0
      %1233 = vmatpush1.msra.mxu0 0.0
      %1234 = vmatprep.subr.mxu0 0.0
      %1235 = vmatpush1.msra.mxu0 0.0
      %1236 = vmatprep.subr.mxu0 0.0
      %1237 = vmatpush1.msra.mxu0 0.0
      %1238 = vmatprep.subr.mxu0 0.0
      %1239 = vmatpush1.msra.mxu0 0.0
      %1240 = vmatprep.subr.mxu0 0.0
      %1241 = vmatpush1.msra.mxu0 0.0
      %1242 = vmatprep.subr.mxu0 0.0
      %1243 = vmatpush1.msra.mxu0 0.0
      %1244 = vmatprep.subr.mxu0 0.0
      %1245 = vmatpush1.msra.mxu0 0.0
      %1246 = vmatprep.subr.mxu0 0.0
      %1247 = vmatpush1.msra.mxu0 0.0
      %1248 = vmatprep.subr.mxu0 0.0
      %1249 = vmatpush1.msra.mxu0 0.0
      %1250 = vmatprep.subr.mxu0 0.0
      %1251 = vmatpush1.msra.mxu0 0.0
      %1252 = vmatprep.subr.mxu0 0.0
      %1253 = vmatpush1.msra.mxu0 0.0
      %1254 = vmatprep.subr.mxu0 0.0
      %1255 = vmatpush1.msra.mxu0 0.0
      %1256 = vmatprep.subr.mxu0 0.0
      %1257 = vmatpush1.msra.mxu0 0.0
      %1258 = vmatprep.subr.mxu0 0.0
      %1259 = vmatpush1.msra.mxu0 0.0
      %1260 = vmatprep.subr.mxu0 0.0
      %1261 = vmatpush1.msra.mxu0 0.0
      %1262 = vmatprep.subr.mxu0 0.0
      %1263 = vmatpush1.msra.mxu0 0.0
      %1264 = vmatprep.subr.mxu0 0.0
      %1265 = vmatpush1.msra.mxu0 0.0
      %1266 = vmatprep.subr.mxu0 0.0
      %1267 = vmatpush1.msra.mxu0 0.0
      %1268 = vmatprep.subr.mxu0 0.0
      %1269 = vmatpush1.msra.mxu0 0.0
      %1270 = vmatprep.mubr.f32.mxu0 0.0
      %v1271 = vand.u32 %v1190, 4294901760
      %v1272 = vsub.f32 %v1190, %v1271
      %v1273 = vand.u32 %v1272, 4294901760
      %v1274 = vsub.f32 %v1272, %v1273
      %v1275 = vand.u32 %v1274, 4294901760
      %1276 = vmatmul.mubr.f32.gmra.mrb[0].mxu0 %v1275
      %v1277 = vpop.f32.mrb[0].mxu0
      %v1278 = vadd.f32 0.0, %v1277
      %v1279 = vpop.f32.mrb[0].mxu0
      %1280 = vmatprep.mubr.f32.mxu0 0.0
      %v1281 = vand.u32 %v1193, 4294901760
      %v1282 = vsub.f32 %v1193, %v1281
      %v1283 = vand.u32 %v1282, 4294901760
      %v1284 = vsub.f32 %v1282, %v1283
      %v1285 = vand.u32 %v1284, 4294901760
      %1286 = vmatmul.mubr.f32.gmra.mrb[0].mxu0 %v1285
      %v1287 = vpop.f32.mrb[0].mxu0
      %v1288 = vadd.f32 0.0, %v1287
      %v1289 = vpop.f32.mrb[0].mxu0
      %1290 = vmatprep.mubr.f32.mxu0 0.0
      %v1291 = vand.u32 %v1196, 4294901760
      %v1292 = vsub.f32 %v1196, %v1291
      %v1293 = vand.u32 %v1292, 4294901760
      %v1294 = vsub.f32 %v1292, %v1293
      %v1295 = vand.u32 %v1294, 4294901760
      %1296 = vmatmul.mubr.f32.gmra.mrb[0].mxu0 %v1295
      %v1297 = vpop.f32.mrb[0].mxu0
      %v1298 = vadd.f32 0.0, %v1297
      %v1299 = vpop.f32.mrb[0].mxu0
      %1300 = vmatprep.mubr.f32.mxu0 0.0
      %v1301 = vand.u32 %v1199, 4294901760
      %v1302 = vsub.f32 %v1199, %v1301
      %v1303 = vand.u32 %v1302, 4294901760
      %v1304 = vsub.f32 %v1302, %v1303
      %v1305 = vand.u32 %v1304, 4294901760
      %1306 = vmatmul.mubr.f32.gmra.mrb[0].mxu0 %v1305
      %v1307 = vpop.f32.mrb[0].mxu0
      %v1308 = vadd.f32 0.0, %v1307
      %v1309 = vpop.f32.mrb[0].mxu0
      %1310 = vdwg.mxu0
      %1311 = vmatprep.subr.mxu0 0.0
      %v1312 = vand.u32 %v1203, 4294901760
      %v1313 = vsub.f32 %v1203, %v1312
      %v1314 = vand.u32 %v1313, 4294901760
      %v1315 = vsub.f32 %v1313, %v1314
      %v1316 = vand.u32 %v1315, 4294901760
      %1317 = vmatpush1.msra.mxu0 %v1316
      %1318 = vmatprep.subr.mxu0 0.0
      %1319 = vmatpush1.msra.mxu0 0.0
      %1320 = vmatprep.subr.mxu0 0.0
      %1321 = vmatpush1.msra.mxu0 0.0
      %1322 = vmatprep.subr.mxu0 0.0
      %1323 = vmatpush1.msra.mxu0 0.0
      %1324 = vmatprep.subr.mxu0 0.0
      %1325 = vmatpush1.msra.mxu0 0.0
      %1326 = vmatprep.subr.mxu0 0.0
      %1327 = vmatpush1.msra.mxu0 0.0
      %1328 = vmatprep.subr.mxu0 0.0
      %1329 = vmatpush1.msra.mxu0 0.0
      %1330 = vmatprep.subr.mxu0 0.0
      %1331 = vmatpush1.msra.mxu0 0.0
      %1332 = vmatprep.subr.mxu0 0.0
      %1333 = vmatpush1.msra.mxu0 0.0
      %1334 = vmatprep.subr.mxu0 0.0
      %1335 = vmatpush1.msra.mxu0 0.0
      %1336 = vmatprep.subr.mxu0 0.0
      %1337 = vmatpush1.msra.mxu0 0.0
      %1338 = vmatprep.subr.mxu0 0.0
      %1339 = vmatpush1.msra.mxu0 0.0
      %1340 = vmatprep.subr.mxu0 0.0
      %1341 = vmatpush1.msra.mxu0 0.0
      %1342 = vmatprep.subr.mxu0 0.0
      %1343 = vmatpush1.msra.mxu0 0.0
      %1344 = vmatprep.subr.mxu0 0.0
      %1345 = vmatpush1.msra.mxu0 0.0
      %1346 = vmatprep.subr.mxu0 0.0
      %1347 = vmatpush1.msra.mxu0 0.0
      %1348 = vmatprep.subr.mxu0 0.0
      %1349 = vmatpush1.msra.mxu0 0.0
      %1350 = vmatprep.subr.mxu0 0.0
      %1351 = vmatpush1.msra.mxu0 0.0
      %1352 = vmatprep.subr.mxu0 0.0
      %1353 = vmatpush1.msra.mxu0 0.0
      %1354 = vmatprep.subr.mxu0 0.0
      %1355 = vmatpush1.msra.mxu0 0.0
      %1356 = vmatprep.subr.mxu0 0.0
      %1357 = vmatpush1.msra.mxu0 0.0
      %1358 = vmatprep.subr.mxu0 0.0
      %1359 = vmatpush1.msra.mxu0 0.0
      %1360 = vmatprep.subr.mxu0 0.0
      %1361 = vmatpush1.msra.mxu0 0.0
      %1362 = vmatprep.subr.mxu0 0.0
      %1363 = vmatpush1.msra.mxu0 0.0
      %1364 = vmatprep.subr.mxu0 0.0
      %1365 = vmatpush1.msra.mxu0 0.0
      %1366 = vmatprep.subr.mxu0 0.0
      %1367 = vmatpush1.msra.mxu0 0.0
      %1368 = vmatprep.subr.mxu0 0.0
      %1369 = vmatpush1.msra.mxu0 0.0
      %1370 = vmatprep.subr.mxu0 0.0
      %1371 = vmatpush1.msra.mxu0 0.0
      %1372 = vmatprep.subr.mxu0 0.0
      %1373 = vmatpush1.msra.mxu0 0.0
      %1374 = vmatprep.subr.mxu0 0.0
      %1375 = vmatpush1.msra.mxu0 0.0
      %1376 = vmatprep.subr.mxu0 0.0
      %1377 = vmatpush1.msra.mxu0 0.0
      %1378 = vmatprep.subr.mxu0 0.0
      %1379 = vmatpush1.msra.mxu0 0.0
      %1380 = vmatprep.mubr.f32.mxu0 0.0
      %v1381 = vand.u32 %v1190, 4294901760
      %1382 = vmatmul.mubr.f32.gmra.mrb[0].mxu0 %v1381
      %v1383 = vpop.f32.mrb[0].mxu0
      %v1384 = vadd.f32 %v1278, %v1383
      %v1385 = vpop.f32.mrb[0].mxu0
      %1386 = vmatprep.mubr.f32.mxu0 0.0
      %v1387 = vand.u32 %v1193, 4294901760
      %1388 = vmatmul.mubr.f32.gmra.mrb[0].mxu0 %v1387
      %v1389 = vpop.f32.mrb[0].mxu0
      %v1390 = vadd.f32 %v1288, %v1389
      %v1391 = vpop.f32.mrb[0].mxu0
      %1392 = vmatprep.mubr.f32.mxu0 0.0
      %v1393 = vand.u32 %v1196, 4294901760
      %1394 = vmatmul.mubr.f32.gmra.mrb[0].mxu0 %v1393
      %v1395 = vpop.f32.mrb[0].mxu0
      %v1396 = vadd.f32 %v1298, %v1395
      %v1397 = vpop.f32.mrb[0].mxu0
      %1398 = vmatprep.mubr.f32.mxu0 0.0
      %v1399 = vand.u32 %v1199, 4294901760
      %1400 = vmatmul.mubr.f32.gmra.mrb[0].mxu0 %v1399
      %v1401 = vpop.f32.mrb[0].mxu0
      %v1402 = vadd.f32 %v1308, %v1401
      %v1403 = vpop.f32.mrb[0].mxu0
      %1404 = vdwg.mxu0
      %1405 = vmatprep.subr.mxu0 0.0
      %v1406 = vand.u32 %v1203, 4294901760
      %v1407 = vsub.f32 %v1203, %v1406
      %1408 = vmatpush1.msra.mxu0 %v1407
      %1409 = vmatprep.subr.mxu0 0.0
      %1410 = vmatpush1.msra.mxu0 0.0
      %1411 = vmatprep.subr.mxu0 0.0
      %1412 = vmatpush1.msra.mxu0 0.0
      %1413 = vmatprep.subr.mxu0 0.0
      %1414 = vmatpush1.msra.mxu0 0.0
      %1415 = vmatprep.subr.mxu0 0.0
      %1416 = vmatpush1.msra.mxu0 0.0
      %1417 = vmatprep.subr.mxu0 0.0
      %1418 = vmatpush1.msra.mxu0 0.0
      %1419 = vmatprep.subr.mxu0 0.0
      %1420 = vmatpush1.msra.mxu0 0.0
      %1421 = vmatprep.subr.mxu0 0.0
      %1422 = vmatpush1.msra.mxu0 0.0
      %1423 = vmatprep.subr.mxu0 0.0
      %1424 = vmatpush1.msra.mxu0 0.0
      %1425 = vmatprep.subr.mxu0 0.0
      %1426 = vmatpush1.msra.mxu0 0.0
      %1427 = vmatprep.subr.mxu0 0.0
      %1428 = vmatpush1.msra.mxu0 0.0
      %1429 = vmatprep.subr.mxu0 0.0
      %1430 = vmatpush1.msra.mxu0 0.0
      %1431 = vmatprep.subr.mxu0 0.0
      %1432 = vmatpush1.msra.mxu0 0.0
      %1433 = vmatprep.subr.mxu0 0.0
      %1434 = vmatpush1.msra.mxu0 0.0
      %1435 = vmatprep.subr.mxu0 0.0
      %1436 = vmatpush1.msra.mxu0 0.0
      %1437 = vmatprep.subr.mxu0 0.0
      %1438 = vmatpush1.msra.mxu0 0.0
      %1439 = vmatprep.subr.mxu0 0.0
      %1440 = vmatpush1.msra.mxu0 0.0
      %1441 = vmatprep.subr.mxu0 0.0
      %1442 = vmatpush1.msra.mxu0 0.0
      %1443 = vmatprep.subr.mxu0 0.0
      %1444 = vmatpush1.msra.mxu0 0.0
      %1445 = vmatprep.subr.mxu0 0.0
      %1446 = vmatpush1.msra.mxu0 0.0
      %1447 = vmatprep.subr.mxu0 0.0
      %1448 = vmatpush1.msra.mxu0 0.0
      %1449 = vmatprep.subr.mxu0 0.0
      %1450 = vmatpush1.msra.mxu0 0.0
      %1451 = vmatprep.subr.mxu0 0.0
      %1452 = vmatpush1.msra.mxu0 0.0
      %1453 = vmatprep.subr.mxu0 0.0
      %1454 = vmatpush1.msra.mxu0 0.0
      %1455 = vmatprep.subr.mxu0 0.0
      %1456 = vmatpush1.msra.mxu0 0.0
      %1457 = vmatprep.subr.mxu0 0.0
      %1458 = vmatpush1.msra.mxu0 0.0
      %1459 = vmatprep.subr.mxu0 0.0
      %1460 = vmatpush1.msra.mxu0 0.0
      %1461 = vmatprep.subr.mxu0 0.0
      %1462 = vmatpush1.msra.mxu0 0.0
      %1463 = vmatprep.subr.mxu0 0.0
      %1464 = vmatpush1.msra.mxu0 0.0
      %1465 = vmatprep.subr.mxu0 0.0
      %1466 = vmatpush1.msra.mxu0 0.0
      %1467 = vmatprep.subr.mxu0 0.0
      %1468 = vmatpush1.msra.mxu0 0.0
      %1469 = vmatprep.subr.mxu0 0.0
      %1470 = vmatpush1.msra.mxu0 0.0
      %1471 = vmatprep.mubr.f32.mxu0 0.0
      %v1472 = vand.u32 %v1190, 4294901760
      %v1473 = vsub.f32 %v1190, %v1472
      %1474 = vmatmul.mubr.f32.gmra.mrb[0].mxu0 %v1473
      %v1475 = vpop.f32.mrb[0].mxu0
      %v1476 = vadd.f32 %v1384, %v1475
      %v1477 = vpop.f32.mrb[0].mxu0
      %1478 = vmatprep.mubr.f32.mxu0 0.0
      %v1479 = vand.u32 %v1193, 4294901760
      %v1480 = vsub.f32 %v1193, %v1479
      %1481 = vmatmul.mubr.f32.gmra.mrb[0].mxu0 %v1480
      %v1482 = vpop.f32.mrb[0].mxu0
      %v1483 = vadd.f32 %v1390, %v1482
      %v1484 = vpop.f32.mrb[0].mxu0
      %1485 = vmatprep.mubr.f32.mxu0 0.0
      %v1486 = vand.u32 %v1196, 4294901760
      %v1487 = vsub.f32 %v1196, %v1486
      %1488 = vmatmul.mubr.f32.gmra.mrb[0].mxu0 %v1487
      %v1489 = vpop.f32.mrb[0].mxu0
      %v1490 = vadd.f32 %v1396, %v1489
      %v1491 = vpop.f32.mrb[0].mxu0
      %1492 = vmatprep.mubr.f32.mxu0 0.0
      %v1493 = vand.u32 %v1199, 4294901760
      %v1494 = vsub.f32 %v1199, %v1493
      %1495 = vmatmul.mubr.f32.gmra.mrb[0].mxu0 %v1494
      %v1496 = vpop.f32.mrb[0].mxu0
      %v1497 = vadd.f32 %v1402, %v1496
      %v1498 = vpop.f32.mrb[0].mxu0
      %1499 = vdwg.mxu0
      %1500 = vmatprep.subr.mxu0 0.0
      %v1501 = vand.u32 %v1203, 4294901760
      %1502 = vmatpush1.msra.mxu0 %v1501
      %1503 = vmatprep.subr.mxu0 0.0
      %1504 = vmatpush1.msra.mxu0 0.0
      %1505 = vmatprep.subr.mxu0 0.0
      %1506 = vmatpush1.msra.mxu0 0.0
      %1507 = vmatprep.subr.mxu0 0.0
      %1508 = vmatpush1.msra.mxu0 0.0
      %1509 = vmatprep.subr.mxu0 0.0
      %1510 = vmatpush1.msra.mxu0 0.0
      %1511 = vmatprep.subr.mxu0 0.0
      %1512 = vmatpush1.msra.mxu0 0.0
      %1513 = vmatprep.subr.mxu0 0.0
      %1514 = vmatpush1.msra.mxu0 0.0
      %1515 = vmatprep.subr.mxu0 0.0
      %1516 = vmatpush1.msra.mxu0 0.0
      %1517 = vmatprep.subr.mxu0 0.0
      %1518 = vmatpush1.msra.mxu0 0.0
      %1519 = vmatprep.subr.mxu0 0.0
      %1520 = vmatpush1.msra.mxu0 0.0
      %1521 = vmatprep.subr.mxu0 0.0
      %1522 = vmatpush1.msra.mxu0 0.0
      %1523 = vmatprep.subr.mxu0 0.0
      %1524 = vmatpush1.msra.mxu0 0.0
      %1525 = vmatprep.subr.mxu0 0.0
      %1526 = vmatpush1.msra.mxu0 0.0
      %1527 = vmatprep.subr.mxu0 0.0
      %1528 = vmatpush1.msra.mxu0 0.0
      %1529 = vmatprep.subr.mxu0 0.0
      %1530 = vmatpush1.msra.mxu0 0.0
      %1531 = vmatprep.subr.mxu0 0.0
      %1532 = vmatpush1.msra.mxu0 0.0
      %1533 = vmatprep.subr.mxu0 0.0
      %1534 = vmatpush1.msra.mxu0 0.0
      %1535 = vmatprep.subr.mxu0 0.0
      %1536 = vmatpush1.msra.mxu0 0.0
      %1537 = vmatprep.subr.mxu0 0.0
      %1538 = vmatpush1.msra.mxu0 0.0
      %1539 = vmatprep.subr.mxu0 0.0
      %1540 = vmatpush1.msra.mxu0 0.0
      %1541 = vmatprep.subr.mxu0 0.0
      %1542 = vmatpush1.msra.mxu0 0.0
      %1543 = vmatprep.subr.mxu0 0.0
      %1544 = vmatpush1.msra.mxu0 0.0
      %1545 = vmatprep.subr.mxu0 0.0
      %1546 = vmatpush1.msra.mxu0 0.0
      %1547 = vmatprep.subr.mxu0 0.0
      %1548 = vmatpush1.msra.mxu0 0.0
      %1549 = vmatprep.subr.mxu0 0.0
      %1550 = vmatpush1.msra.mxu0 0.0
      %1551 = vmatprep.subr.mxu0 0.0
      %1552 = vmatpush1.msra.mxu0 0.0
      %1553 = vmatprep.subr.mxu0 0.0
      %1554 = vmatpush1.msra.mxu0 0.0
      %1555 = vmatprep.subr.mxu0 0.0
      %1556 = vmatpush1.msra.mxu0 0.0
      %1557 = vmatprep.subr.mxu0 0.0
      %1558 = vmatpush1.msra.mxu0 0.0
      %1559 = vmatprep.subr.mxu0 0.0
      %1560 = vmatpush1.msra.mxu0 0.0
      %1561 = vmatprep.subr.mxu0 0.0
      %1562 = vmatpush1.msra.mxu0 0.0
      %1563 = vmatprep.subr.mxu0 0.0
      %1564 = vmatpush1.msra.mxu0 0.0
      %1565 = vmatprep.mubr.f32.mxu0 0.0
      %v1566 = vand.u32 %v1190, 4294901760
      %v1567 = vsub.f32 %v1190, %v1566
      %v1568 = vand.u32 %v1567, 4294901760
      %1569 = vmatmul.mubr.f32.gmra.mrb[0].mxu0 %v1568
      %v1570 = vpop.f32.mrb[0].mxu0
      %v1571 = vadd.f32 %v1476, %v1570
      %v1572 = vpop.f32.mrb[0].mxu0
      %1573 = vmatprep.mubr.f32.mxu0 0.0
      %v1574 = vand.u32 %v1193, 4294901760
      %v1575 = vsub.f32 %v1193, %v1574
      %v1576 = vand.u32 %v1575, 4294901760
      %1577 = vmatmul.mubr.f32.gmra.mrb[0].mxu0 %v1576
      %v1578 = vpop.f32.mrb[0].mxu0
      %v1579 = vadd.f32 %v1483, %v1578
      %v1580 = vpop.f32.mrb[0].mxu0
      %1581 = vmatprep.mubr.f32.mxu0 0.0
      %v1582 = vand.u32 %v1196, 4294901760
      %v1583 = vsub.f32 %v1196, %v1582
      %v1584 = vand.u32 %v1583, 4294901760
      %1585 = vmatmul.mubr.f32.gmra.mrb[0].mxu0 %v1584
      %v1586 = vpop.f32.mrb[0].mxu0
      %v1587 = vadd.f32 %v1490, %v1586
      %v1588 = vpop.f32.mrb[0].mxu0
      %1589 = vmatprep.mubr.f32.mxu0 0.0
      %v1590 = vand.u32 %v1199, 4294901760
      %v1591 = vsub.f32 %v1199, %v1590
      %v1592 = vand.u32 %v1591, 4294901760
      %1593 = vmatmul.mubr.f32.gmra.mrb[0].mxu0 %v1592
      %v1594 = vpop.f32.mrb[0].mxu0
      %v1595 = vadd.f32 %v1497, %v1594
      %v1596 = vpop.f32.mrb[0].mxu0
      %1597 = vdwg.mxu0
      %1598 = vmatprep.subr.mxu0 0.0
      %v1599 = vand.u32 %v1203, 4294901760
      %v1600 = vsub.f32 %v1203, %v1599
      %v1601 = vand.u32 %v1600, 4294901760
      %1602 = vmatpush1.msra.mxu0 %v1601
      %1603 = vmatprep.subr.mxu0 0.0
      %1604 = vmatpush1.msra.mxu0 0.0
      %1605 = vmatprep.subr.mxu0 0.0
      %1606 = vmatpush1.msra.mxu0 0.0
      %1607 = vmatprep.subr.mxu0 0.0
      %1608 = vmatpush1.msra.mxu0 0.0
      %1609 = vmatprep.subr.mxu0 0.0
      %1610 = vmatpush1.msra.mxu0 0.0
      %1611 = vmatprep.subr.mxu0 0.0
      %1612 = vmatpush1.msra.mxu0 0.0
      %1613 = vmatprep.subr.mxu0 0.0
      %1614 = vmatpush1.msra.mxu0 0.0
      %1615 = vmatprep.subr.mxu0 0.0
      %1616 = vmatpush1.msra.mxu0 0.0
      %1617 = vmatprep.subr.mxu0 0.0
      %1618 = vmatpush1.msra.mxu0 0.0
      %1619 = vmatprep.subr.mxu0 0.0
      %1620 = vmatpush1.msra.mxu0 0.0
      %1621 = vmatprep.subr.mxu0 0.0
      %1622 = vmatpush1.msra.mxu0 0.0
      %1623 = vmatprep.subr.mxu0 0.0
      %1624 = vmatpush1.msra.mxu0 0.0
      %1625 = vmatprep.subr.mxu0 0.0
      %1626 = vmatpush1.msra.mxu0 0.0
      %1627 = vmatprep.subr.mxu0 0.0
      %1628 = vmatpush1.msra.mxu0 0.0
      %1629 = vmatprep.subr.mxu0 0.0
      %1630 = vmatpush1.msra.mxu0 0.0
      %1631 = vmatprep.subr.mxu0 0.0
      %1632 = vmatpush1.msra.mxu0 0.0
      %1633 = vmatprep.subr.mxu0 0.0
      %1634 = vmatpush1.msra.mxu0 0.0
      %1635 = vmatprep.subr.mxu0 0.0
      %1636 = vmatpush1.msra.mxu0 0.0
      %1637 = vmatprep.subr.mxu0 0.0
      %1638 = vmatpush1.msra.mxu0 0.0
      %1639 = vmatprep.subr.mxu0 0.0
      %1640 = vmatpush1.msra.mxu0 0.0
      %1641 = vmatprep.subr.mxu0 0.0
      %1642 = vmatpush1.msra.mxu0 0.0
      %1643 = vmatprep.subr.mxu0 0.0
      %1644 = vmatpush1.msra.mxu0 0.0
      %1645 = vmatprep.subr.mxu0 0.0
      %1646 = vmatpush1.msra.mxu0 0.0
      %1647 = vmatprep.subr.mxu0 0.0
      %1648 = vmatpush1.msra.mxu0 0.0
      %1649 = vmatprep.subr.mxu0 0.0
      %1650 = vmatpush1.msra.mxu0 0.0
      %1651 = vmatprep.subr.mxu0 0.0
      %1652 = vmatpush1.msra.mxu0 0.0
      %1653 = vmatprep.subr.mxu0 0.0
      %1654 = vmatpush1.msra.mxu0 0.0
      %1655 = vmatprep.subr.mxu0 0.0
      %1656 = vmatpush1.msra.mxu0 0.0
      %1657 = vmatprep.subr.mxu0 0.0
      %1658 = vmatpush1.msra.mxu0 0.0
      %1659 = vmatprep.subr.mxu0 0.0
      %1660 = vmatpush1.msra.mxu0 0.0
      %1661 = vmatprep.subr.mxu0 0.0
      %1662 = vmatpush1.msra.mxu0 0.0
      %1663 = vmatprep.subr.mxu0 0.0
      %1664 = vmatpush1.msra.mxu0 0.0
      %1665 = vmatprep.mubr.f32.mxu0 0.0
      %v1666 = vand.u32 %v1190, 4294901760
      %1667 = vmatmul.mubr.f32.gmra.mrb[0].mxu0 %v1666
      %v1668 = vpop.f32.mrb[0].mxu0
      %v1669 = vadd.f32 %v1571, %v1668
      %v1670 = vpop.f32.mrb[0].mxu0
      %1671 = vmatprep.mubr.f32.mxu0 0.0
      %v1672 = vand.u32 %v1193, 4294901760
      %1673 = vmatmul.mubr.f32.gmra.mrb[0].mxu0 %v1672
      %v1674 = vpop.f32.mrb[0].mxu0
      %v1675 = vadd.f32 %v1579, %v1674
      %v1676 = vpop.f32.mrb[0].mxu0
      %1677 = vmatprep.mubr.f32.mxu0 0.0
      %v1678 = vand.u32 %v1196, 4294901760
      %1679 = vmatmul.mubr.f32.gmra.mrb[0].mxu0 %v1678
      %v1680 = vpop.f32.mrb[0].mxu0
      %v1681 = vadd.f32 %v1587, %v1680
      %v1682 = vpop.f32.mrb[0].mxu0
      %1683 = vmatprep.mubr.f32.mxu0 0.0
      %v1684 = vand.u32 %v1199, 4294901760
      %1685 = vmatmul.mubr.f32.gmra.mrb[0].mxu0 %v1684
      %v1686 = vpop.f32.mrb[0].mxu0
      %v1687 = vadd.f32 %v1595, %v1686
      %v1688 = vpop.f32.mrb[0].mxu0
      %1689 = vdwg.mxu0
      %1690 = vmatprep.subr.mxu0 0.0
      %v1691 = vand.u32 %v1203, 4294901760
      %1692 = vmatpush1.msra.mxu0 %v1691
      %1693 = vmatprep.subr.mxu0 0.0
      %1694 = vmatpush1.msra.mxu0 0.0
      %1695 = vmatprep.subr.mxu0 0.0
      %1696 = vmatpush1.msra.mxu0 0.0
      %1697 = vmatprep.subr.mxu0 0.0
      %1698 = vmatpush1.msra.mxu0 0.0
      %1699 = vmatprep.subr.mxu0 0.0
      %1700 = vmatpush1.msra.mxu0 0.0
      %1701 = vmatprep.subr.mxu0 0.0
      %1702 = vmatpush1.msra.mxu0 0.0
      %1703 = vmatprep.subr.mxu0 0.0
      %1704 = vmatpush1.msra.mxu0 0.0
      %1705 = vmatprep.subr.mxu0 0.0
      %1706 = vmatpush1.msra.mxu0 0.0
      %1707 = vmatprep.subr.mxu0 0.0
      %1708 = vmatpush1.msra.mxu0 0.0
      %1709 = vmatprep.subr.mxu0 0.0
      %1710 = vmatpush1.msra.mxu0 0.0
      %1711 = vmatprep.subr.mxu0 0.0
      %1712 = vmatpush1.msra.mxu0 0.0
      %1713 = vmatprep.subr.mxu0 0.0
      %1714 = vmatpush1.msra.mxu0 0.0
      %1715 = vmatprep.subr.mxu0 0.0
      %1716 = vmatpush1.msra.mxu0 0.0
      %1717 = vmatprep.subr.mxu0 0.0
      %1718 = vmatpush1.msra.mxu0 0.0
      %1719 = vmatprep.subr.mxu0 0.0
      %1720 = vmatpush1.msra.mxu0 0.0
      %1721 = vmatprep.subr.mxu0 0.0
      %1722 = vmatpush1.msra.mxu0 0.0
      %1723 = vmatprep.subr.mxu0 0.0
      %1724 = vmatpush1.msra.mxu0 0.0
      %1725 = vmatprep.subr.mxu0 0.0
      %1726 = vmatpush1.msra.mxu0 0.0
      %1727 = vmatprep.subr.mxu0 0.0
      %1728 = vmatpush1.msra.mxu0 0.0
      %1729 = vmatprep.subr.mxu0 0.0
      %1730 = vmatpush1.msra.mxu0 0.0
      %1731 = vmatprep.subr.mxu0 0.0
      %1732 = vmatpush1.msra.mxu0 0.0
      %1733 = vmatprep.subr.mxu0 0.0
      %1734 = vmatpush1.msra.mxu0 0.0
      %1735 = vmatprep.subr.mxu0 0.0
      %1736 = vmatpush1.msra.mxu0 0.0
      %1737 = vmatprep.subr.mxu0 0.0
      %1738 = vmatpush1.msra.mxu0 0.0
      %1739 = vmatprep.subr.mxu0 0.0
      %1740 = vmatpush1.msra.mxu0 0.0
      %1741 = vmatprep.subr.mxu0 0.0
      %1742 = vmatpush1.msra.mxu0 0.0
      %1743 = vmatprep.subr.mxu0 0.0
      %1744 = vmatpush1.msra.mxu0 0.0
      %1745 = vmatprep.subr.mxu0 0.0
      %1746 = vmatpush1.msra.mxu0 0.0
      %1747 = vmatprep.subr.mxu0 0.0
      %1748 = vmatpush1.msra.mxu0 0.0
      %1749 = vmatprep.subr.mxu0 0.0
      %1750 = vmatpush1.msra.mxu0 0.0
      %1751 = vmatprep.subr.mxu0 0.0
      %1752 = vmatpush1.msra.mxu0 0.0
      %1753 = vmatprep.subr.mxu0 0.0
      %1754 = vmatpush1.msra.mxu0 0.0
      %1755 = vmatprep.mubr.f32.mxu0 0.0
      %v1756 = vand.u32 %v1190, 4294901760
      %1757 = vmatmul.mubr.f32.gmra.mrb[0].mxu0 %v1756
      %v1758 = vpop.f32.mrb[0].mxu0
      %v1759 = vadd.f32 %v1669, %v1758
      %v1760 = vpop.f32.mrb[0].mxu0
      %1761 = vmatprep.mubr.f32.mxu0 0.0
      %v1762 = vand.u32 %v1193, 4294901760
      %1763 = vmatmul.mubr.f32.gmra.mrb[0].mxu0 %v1762
      %v1764 = vpop.f32.mrb[0].mxu0
      %v1765 = vadd.f32 %v1675, %v1764
      %v1766 = vpop.f32.mrb[0].mxu0
      %1767 = vmatprep.mubr.f32.mxu0 0.0
      %v1768 = vand.u32 %v1196, 4294901760
      %1769 = vmatmul.mubr.f32.gmra.mrb[0].mxu0 %v1768
      %v1770 = vpop.f32.mrb[0].mxu0
      %v1771 = vadd.f32 %v1681, %v1770
      %v1772 = vpop.f32.mrb[0].mxu0
      %1773 = vmatprep.mubr.f32.mxu0 0.0
      %v1774 = vand.u32 %v1199, 4294901760
      %1775 = vmatmul.mubr.f32.gmra.mrb[0].mxu0 %v1774
      %v1776 = vpop.f32.mrb[0].mxu0
      %v1777 = vadd.f32 %v1687, %v1776
      %v1778 = vpop.f32.mrb[0].mxu0
      %1779 = vdwg.mxu0
      %v1781 = vsel %vm1201, %v701, 0
      %1783 = vmatprep.subr.mxu0 0.0
      %v1784 = vand.u32 %v1781, 4294901760
      %1785 = vmatpush1.msra.mxu0 %v1784
      %1786 = vmatprep.subr.mxu0 0.0
      %1787 = vmatpush1.msra.mxu0 0.0
      %1788 = vmatprep.subr.mxu0 0.0
      %1789 = vmatpush1.msra.mxu0 0.0
      %1790 = vmatprep.subr.mxu0 0.0
      %1791 = vmatpush1.msra.mxu0 0.0
      %1792 = vmatprep.subr.mxu0 0.0
      %1793 = vmatpush1.msra.mxu0 0.0
      %1794 = vmatprep.subr.mxu0 0.0
      %1795 = vmatpush1.msra.mxu0 0.0
      %1796 = vmatprep.subr.mxu0 0.0
      %1797 = vmatpush1.msra.mxu0 0.0
      %1798 = vmatprep.subr.mxu0 0.0
      %1799 = vmatpush1.msra.mxu0 0.0
      %1800 = vmatprep.subr.mxu0 0.0
      %1801 = vmatpush1.msra.mxu0 0.0
      %1802 = vmatprep.subr.mxu0 0.0
      %1803 = vmatpush1.msra.mxu0 0.0
      %1804 = vmatprep.subr.mxu0 0.0
      %1805 = vmatpush1.msra.mxu0 0.0
      %1806 = vmatprep.subr.mxu0 0.0
      %1807 = vmatpush1.msra.mxu0 0.0
      %1808 = vmatprep.subr.mxu0 0.0
      %1809 = vmatpush1.msra.mxu0 0.0
      %1810 = vmatprep.subr.mxu0 0.0
      %1811 = vmatpush1.msra.mxu0 0.0
      %1812 = vmatprep.subr.mxu0 0.0
      %1813 = vmatpush1.msra.mxu0 0.0
      %1814 = vmatprep.subr.mxu0 0.0
      %1815 = vmatpush1.msra.mxu0 0.0
      %1816 = vmatprep.subr.mxu0 0.0
      %1817 = vmatpush1.msra.mxu0 0.0
      %1818 = vmatprep.subr.mxu0 0.0
      %1819 = vmatpush1.msra.mxu0 0.0
      %1820 = vmatprep.subr.mxu0 0.0
      %1821 = vmatpush1.msra.mxu0 0.0
      %1822 = vmatprep.subr.mxu0 0.0
      %1823 = vmatpush1.msra.mxu0 0.0
      %1824 = vmatprep.subr.mxu0 0.0
      %1825 = vmatpush1.msra.mxu0 0.0
      %1826 = vmatprep.subr.mxu0 0.0
      %1827 = vmatpush1.msra.mxu0 0.0
      %1828 = vmatprep.subr.mxu0 0.0
      %1829 = vmatpush1.msra.mxu0 0.0
      %1830 = vmatprep.subr.mxu0 0.0
      %1831 = vmatpush1.msra.mxu0 0.0
      %1832 = vmatprep.subr.mxu0 0.0
      %1833 = vmatpush1.msra.mxu0 0.0
      %1834 = vmatprep.subr.mxu0 0.0
      %1835 = vmatpush1.msra.mxu0 0.0
      %1836 = vmatprep.subr.mxu0 0.0
      %1837 = vmatpush1.msra.mxu0 0.0
      %1838 = vmatprep.subr.mxu0 0.0
      %1839 = vmatpush1.msra.mxu0 0.0
      %1840 = vmatprep.subr.mxu0 0.0
      %1841 = vmatpush1.msra.mxu0 0.0
      %1842 = vmatprep.subr.mxu0 0.0
      %1843 = vmatpush1.msra.mxu0 0.0
      %1844 = vmatprep.subr.mxu0 0.0
      %1845 = vmatpush1.msra.mxu0 0.0
      %1846 = vmatprep.subr.mxu0 0.0
      %1847 = vmatpush1.msra.mxu0 0.0
      %1848 = vmatprep.mubr.f32.mxu0 0.0
      %v1849 = vand.u32 %v1190, 4294901760
      %v1850 = vsub.f32 %v1190, %v1849
      %v1851 = vand.u32 %v1850, 4294901760
      %v1852 = vsub.f32 %v1850, %v1851
      %v1853 = vand.u32 %v1852, 4294901760
      %1854 = vmatmul.mubr.f32.gmra.mrb[0].mxu0 %v1853
      %v1855 = vpop.f32.mrb[0].mxu0
      %v1856 = vadd.f32 %v1759, %v1855
      %v1857 = vpop.f32.mrb[0].mxu0
      %1858 = vmatprep.mubr.f32.mxu0 0.0
      %v1859 = vand.u32 %v1193, 4294901760
      %v1860 = vsub.f32 %v1193, %v1859
      %v1861 = vand.u32 %v1860, 4294901760
      %v1862 = vsub.f32 %v1860, %v1861
      %v1863 = vand.u32 %v1862, 4294901760
      %1864 = vmatmul.mubr.f32.gmra.mrb[0].mxu0 %v1863
      %v1865 = vpop.f32.mrb[0].mxu0
      %v1866 = vadd.f32 %v1765, %v1865
      %v1867 = vpop.f32.mrb[0].mxu0
      %1868 = vmatprep.mubr.f32.mxu0 0.0
      %v1869 = vand.u32 %v1196, 4294901760
      %v1870 = vsub.f32 %v1196, %v1869
      %v1871 = vand.u32 %v1870, 4294901760
      %v1872 = vsub.f32 %v1870, %v1871
      %v1873 = vand.u32 %v1872, 4294901760
      %1874 = vmatmul.mubr.f32.gmra.mrb[0].mxu0 %v1873
      %v1875 = vpop.f32.mrb[0].mxu0
      %v1876 = vadd.f32 %v1771, %v1875
      %v1877 = vpop.f32.mrb[0].mxu0
      %1878 = vmatprep.mubr.f32.mxu0 0.0
      %v1879 = vand.u32 %v1199, 4294901760
      %v1880 = vsub.f32 %v1199, %v1879
      %v1881 = vand.u32 %v1880, 4294901760
      %v1882 = vsub.f32 %v1880, %v1881
      %v1883 = vand.u32 %v1882, 4294901760
      %1884 = vmatmul.mubr.f32.gmra.mrb[0].mxu0 %v1883
      %v1885 = vpop.f32.mrb[0].mxu0
      %v1886 = vadd.f32 %v1777, %v1885
      %v1887 = vpop.f32.mrb[0].mxu0
      %1888 = vdwg.mxu0
      %1889 = vmatprep.subr.mxu0 0.0
      %v1890 = vand.u32 %v1781, 4294901760
      %v1891 = vsub.f32 %v1781, %v1890
      %v1892 = vand.u32 %v1891, 4294901760
      %v1893 = vsub.f32 %v1891, %v1892
      %v1894 = vand.u32 %v1893, 4294901760
      %1895 = vmatpush1.msra.mxu0 %v1894
      %1896 = vmatprep.subr.mxu0 0.0
      %1897 = vmatpush1.msra.mxu0 0.0
      %1898 = vmatprep.subr.mxu0 0.0
      %1899 = vmatpush1.msra.mxu0 0.0
      %1900 = vmatprep.subr.mxu0 0.0
      %1901 = vmatpush1.msra.mxu0 0.0
      %1902 = vmatprep.subr.mxu0 0.0
      %1903 = vmatpush1.msra.mxu0 0.0
      %1904 = vmatprep.subr.mxu0 0.0
      %1905 = vmatpush1.msra.mxu0 0.0
      %1906 = vmatprep.subr.mxu0 0.0
      %1907 = vmatpush1.msra.mxu0 0.0
      %1908 = vmatprep.subr.mxu0 0.0
      %1909 = vmatpush1.msra.mxu0 0.0
      %1910 = vmatprep.subr.mxu0 0.0
      %1911 = vmatpush1.msra.mxu0 0.0
      %1912 = vmatprep.subr.mxu0 0.0
      %1913 = vmatpush1.msra.mxu0 0.0
      %1914 = vmatprep.subr.mxu0 0.0
      %1915 = vmatpush1.msra.mxu0 0.0
      %1916 = vmatprep.subr.mxu0 0.0
      %1917 = vmatpush1.msra.mxu0 0.0
      %1918 = vmatprep.subr.mxu0 0.0
      %1919 = vmatpush1.msra.mxu0 0.0
      %1920 = vmatprep.subr.mxu0 0.0
      %1921 = vmatpush1.msra.mxu0 0.0
      %1922 = vmatprep.subr.mxu0 0.0
      %1923 = vmatpush1.msra.mxu0 0.0
      %1924 = vmatprep.subr.mxu0 0.0
      %1925 = vmatpush1.msra.mxu0 0.0
      %1926 = vmatprep.subr.mxu0 0.0
      %1927 = vmatpush1.msra.mxu0 0.0
      %1928 = vmatprep.subr.mxu0 0.0
      %1929 = vmatpush1.msra.mxu0 0.0
      %1930 = vmatprep.subr.mxu0 0.0
      %1931 = vmatpush1.msra.mxu0 0.0
      %1932 = vmatprep.subr.mxu0 0.0
      %1933 = vmatpush1.msra.mxu0 0.0
      %1934 = vmatprep.subr.mxu0 0.0
      %1935 = vmatpush1.msra.mxu0 0.0
      %1936 = vmatprep.subr.mxu0 0.0
      %1937 = vmatpush1.msra.mxu0 0.0
      %1938 = vmatprep.subr.mxu0 0.0
      %1939 = vmatpush1.msra.mxu0 0.0
      %1940 = vmatprep.subr.mxu0 0.0
      %1941 = vmatpush1.msra.mxu0 0.0
      %1942 = vmatprep.subr.mxu0 0.0
      %1943 = vmatpush1.msra.mxu0 0.0
      %1944 = vmatprep.subr.mxu0 0.0
      %1945 = vmatpush1.msra.mxu0 0.0
      %1946 = vmatprep.subr.mxu0 0.0
      %1947 = vmatpush1.msra.mxu0 0.0
      %1948 = vmatprep.subr.mxu0 0.0
      %1949 = vmatpush1.msra.mxu0 0.0
      %1950 = vmatprep.subr.mxu0 0.0
      %1951 = vmatpush1.msra.mxu0 0.0
      %1952 = vmatprep.subr.mxu0 0.0
      %1953 = vmatpush1.msra.mxu0 0.0
      %1954 = vmatprep.subr.mxu0 0.0
      %1955 = vmatpush1.msra.mxu0 0.0
      %1956 = vmatprep.subr.mxu0 0.0
      %1957 = vmatpush1.msra.mxu0 0.0
      %1958 = vmatprep.mubr.f32.mxu0 0.0
      %v1959 = vand.u32 %v1190, 4294901760
      %1960 = vmatmul.mubr.f32.gmra.mrb[0].mxu0 %v1959
      %v1961 = vpop.f32.mrb[0].mxu0
      %v1962 = vadd.f32 %v1856, %v1961
      %v1963 = vpop.f32.mrb[0].mxu0
      %1964 = vmatprep.mubr.f32.mxu0 0.0
      %v1965 = vand.u32 %v1193, 4294901760
      %1966 = vmatmul.mubr.f32.gmra.mrb[0].mxu0 %v1965
      %v1967 = vpop.f32.mrb[0].mxu0
      %v1968 = vadd.f32 %v1866, %v1967
      %v1969 = vpop.f32.mrb[0].mxu0
      %1970 = vmatprep.mubr.f32.mxu0 0.0
      %v1971 = vand.u32 %v1196, 4294901760
      %1972 = vmatmul.mubr.f32.gmra.mrb[0].mxu0 %v1971
      %v1973 = vpop.f32.mrb[0].mxu0
      %v1974 = vadd.f32 %v1876, %v1973
      %v1975 = vpop.f32.mrb[0].mxu0
      %1976 = vmatprep.mubr.f32.mxu0 0.0
      %v1977 = vand.u32 %v1199, 4294901760
      %1978 = vmatmul.mubr.f32.gmra.mrb[0].mxu0 %v1977
      %v1979 = vpop.f32.mrb[0].mxu0
      %v1980 = vadd.f32 %v1886, %v1979
      %v1981 = vpop.f32.mrb[0].mxu0
      %1982 = vdwg.mxu0
      %1983 = vmatprep.subr.mxu0 0.0
      %v1984 = vand.u32 %v1781, 4294901760
      %v1985 = vsub.f32 %v1781, %v1984
      %1986 = vmatpush1.msra.mxu0 %v1985
      %1987 = vmatprep.subr.mxu0 0.0
      %1988 = vmatpush1.msra.mxu0 0.0
      %1989 = vmatprep.subr.mxu0 0.0
      %1990 = vmatpush1.msra.mxu0 0.0
      %1991 = vmatprep.subr.mxu0 0.0
      %1992 = vmatpush1.msra.mxu0 0.0
      %1993 = vmatprep.subr.mxu0 0.0
      %1994 = vmatpush1.msra.mxu0 0.0
      %1995 = vmatprep.subr.mxu0 0.0
      %1996 = vmatpush1.msra.mxu0 0.0
      %1997 = vmatprep.subr.mxu0 0.0
      %1998 = vmatpush1.msra.mxu0 0.0
      %1999 = vmatprep.subr.mxu0 0.0
      %2000 = vmatpush1.msra.mxu0 0.0
      %2001 = vmatprep.subr.mxu0 0.0
      %2002 = vmatpush1.msra.mxu0 0.0
      %2003 = vmatprep.subr.mxu0 0.0
      %2004 = vmatpush1.msra.mxu0 0.0
      %2005 = vmatprep.subr.mxu0 0.0
      %2006 = vmatpush1.msra.mxu0 0.0
      %2007 = vmatprep.subr.mxu0 0.0
      %2008 = vmatpush1.msra.mxu0 0.0
      %2009 = vmatprep.subr.mxu0 0.0
      %2010 = vmatpush1.msra.mxu0 0.0
      %2011 = vmatprep.subr.mxu0 0.0
      %2012 = vmatpush1.msra.mxu0 0.0
      %2013 = vmatprep.subr.mxu0 0.0
      %2014 = vmatpush1.msra.mxu0 0.0
      %2015 = vmatprep.subr.mxu0 0.0
      %2016 = vmatpush1.msra.mxu0 0.0
      %2017 = vmatprep.subr.mxu0 0.0
      %2018 = vmatpush1.msra.mxu0 0.0
      %2019 = vmatprep.subr.mxu0 0.0
      %2020 = vmatpush1.msra.mxu0 0.0
      %2021 = vmatprep.subr.mxu0 0.0
      %2022 = vmatpush1.msra.mxu0 0.0
      %2023 = vmatprep.subr.mxu0 0.0
      %2024 = vmatpush1.msra.mxu0 0.0
      %2025 = vmatprep.subr.mxu0 0.0
      %2026 = vmatpush1.msra.mxu0 0.0
      %2027 = vmatprep.subr.mxu0 0.0
      %2028 = vmatpush1.msra.mxu0 0.0
      %2029 = vmatprep.subr.mxu0 0.0
      %2030 = vmatpush1.msra.mxu0 0.0
      %2031 = vmatprep.subr.mxu0 0.0
      %2032 = vmatpush1.msra.mxu0 0.0
      %2033 = vmatprep.subr.mxu0 0.0
      %2034 = vmatpush1.msra.mxu0 0.0
      %2035 = vmatprep.subr.mxu0 0.0
      %2036 = vmatpush1.msra.mxu0 0.0
      %2037 = vmatprep.subr.mxu0 0.0
      %2038 = vmatpush1.msra.mxu0 0.0
      %2039 = vmatprep.subr.mxu0 0.0
      %2040 = vmatpush1.msra.mxu0 0.0
      %2041 = vmatprep.subr.mxu0 0.0
      %2042 = vmatpush1.msra.mxu0 0.0
      %2043 = vmatprep.subr.mxu0 0.0
      %2044 = vmatpush1.msra.mxu0 0.0
      %2045 = vmatprep.subr.mxu0 0.0
      %2046 = vmatpush1.msra.mxu0 0.0
      %2047 = vmatprep.subr.mxu0 0.0
      %2048 = vmatpush1.msra.mxu0 0.0
      %2049 = vmatprep.mubr.f32.mxu0 0.0
      %v2050 = vand.u32 %v1190, 4294901760
      %v2051 = vsub.f32 %v1190, %v2050
      %2052 = vmatmul.mubr.f32.gmra.mrb[0].mxu0 %v2051
      %v2053 = vpop.f32.mrb[0].mxu0
      %v2054 = vadd.f32 %v1962, %v2053
      %v2055 = vpop.f32.mrb[0].mxu0
      %2056 = vmatprep.mubr.f32.mxu0 0.0
      %v2057 = vand.u32 %v1193, 4294901760
      %v2058 = vsub.f32 %v1193, %v2057
      %2059 = vmatmul.mubr.f32.gmra.mrb[0].mxu0 %v2058
      %v2060 = vpop.f32.mrb[0].mxu0
      %v2061 = vadd.f32 %v1968, %v2060
      %v2062 = vpop.f32.mrb[0].mxu0
      %2063 = vmatprep.mubr.f32.mxu0 0.0
      %v2064 = vand.u32 %v1196, 4294901760
      %v2065 = vsub.f32 %v1196, %v2064
      %2066 = vmatmul.mubr.f32.gmra.mrb[0].mxu0 %v2065
      %v2067 = vpop.f32.mrb[0].mxu0
      %v2068 = vadd.f32 %v1974, %v2067
      %v2069 = vpop.f32.mrb[0].mxu0
      %2070 = vmatprep.mubr.f32.mxu0 0.0
      %v2071 = vand.u32 %v1199, 4294901760
      %v2072 = vsub.f32 %v1199, %v2071
      %2073 = vmatmul.mubr.f32.gmra.mrb[0].mxu0 %v2072
      %v2074 = vpop.f32.mrb[0].mxu0
      %v2075 = vadd.f32 %v1980, %v2074
      %v2076 = vpop.f32.mrb[0].mxu0
      %2077 = vdwg.mxu0
      %2078 = vmatprep.subr.mxu0 0.0
      %v2079 = vand.u32 %v1781, 4294901760
      %2080 = vmatpush1.msra.mxu0 %v2079
      %2081 = vmatprep.subr.mxu0 0.0
      %2082 = vmatpush1.msra.mxu0 0.0
      %2083 = vmatprep.subr.mxu0 0.0
      %2084 = vmatpush1.msra.mxu0 0.0
      %2085 = vmatprep.subr.mxu0 0.0
      %2086 = vmatpush1.msra.mxu0 0.0
      %2087 = vmatprep.subr.mxu0 0.0
      %2088 = vmatpush1.msra.mxu0 0.0
      %2089 = vmatprep.subr.mxu0 0.0
      %2090 = vmatpush1.msra.mxu0 0.0
      %2091 = vmatprep.subr.mxu0 0.0
      %2092 = vmatpush1.msra.mxu0 0.0
      %2093 = vmatprep.subr.mxu0 0.0
      %2094 = vmatpush1.msra.mxu0 0.0
      %2095 = vmatprep.subr.mxu0 0.0
      %2096 = vmatpush1.msra.mxu0 0.0
      %2097 = vmatprep.subr.mxu0 0.0
      %2098 = vmatpush1.msra.mxu0 0.0
      %2099 = vmatprep.subr.mxu0 0.0
      %2100 = vmatpush1.msra.mxu0 0.0
      %2101 = vmatprep.subr.mxu0 0.0
      %2102 = vmatpush1.msra.mxu0 0.0
      %2103 = vmatprep.subr.mxu0 0.0
      %2104 = vmatpush1.msra.mxu0 0.0
      %2105 = vmatprep.subr.mxu0 0.0
      %2106 = vmatpush1.msra.mxu0 0.0
      %2107 = vmatprep.subr.mxu0 0.0
      %2108 = vmatpush1.msra.mxu0 0.0
      %2109 = vmatprep.subr.mxu0 0.0
      %2110 = vmatpush1.msra.mxu0 0.0
      %2111 = vmatprep.subr.mxu0 0.0
      %2112 = vmatpush1.msra.mxu0 0.0
      %2113 = vmatprep.subr.mxu0 0.0
      %2114 = vmatpush1.msra.mxu0 0.0
      %2115 = vmatprep.subr.mxu0 0.0
      %2116 = vmatpush1.msra.mxu0 0.0
      %2117 = vmatprep.subr.mxu0 0.0
      %2118 = vmatpush1.msra.mxu0 0.0
      %2119 = vmatprep.subr.mxu0 0.0
      %2120 = vmatpush1.msra.mxu0 0.0
      %2121 = vmatprep.subr.mxu0 0.0
      %2122 = vmatpush1.msra.mxu0 0.0
      %2123 = vmatprep.subr.mxu0 0.0
      %2124 = vmatpush1.msra.mxu0 0.0
      %2125 = vmatprep.subr.mxu0 0.0
      %2126 = vmatpush1.msra.mxu0 0.0
      %2127 = vmatprep.subr.mxu0 0.0
      %2128 = vmatpush1.msra.mxu0 0.0
      %2129 = vmatprep.subr.mxu0 0.0
      %2130 = vmatpush1.msra.mxu0 0.0
      %2131 = vmatprep.subr.mxu0 0.0
      %2132 = vmatpush1.msra.mxu0 0.0
      %2133 = vmatprep.subr.mxu0 0.0
      %2134 = vmatpush1.msra.mxu0 0.0
      %2135 = vmatprep.subr.mxu0 0.0
      %2136 = vmatpush1.msra.mxu0 0.0
      %2137 = vmatprep.subr.mxu0 0.0
      %2138 = vmatpush1.msra.mxu0 0.0
      %2139 = vmatprep.subr.mxu0 0.0
      %2140 = vmatpush1.msra.mxu0 0.0
      %2141 = vmatprep.subr.mxu0 0.0
      %2142 = vmatpush1.msra.mxu0 0.0
      %2143 = vmatprep.mubr.f32.mxu0 0.0
      %v2144 = vand.u32 %v1190, 4294901760
      %v2145 = vsub.f32 %v1190, %v2144
      %v2146 = vand.u32 %v2145, 4294901760
      %2147 = vmatmul.mubr.f32.gmra.mrb[0].mxu0 %v2146
      %v2148 = vpop.f32.mrb[0].mxu0
      %v2149 = vadd.f32 %v2054, %v2148
      %v2150 = vpop.f32.mrb[0].mxu0
      %2151 = vmatprep.mubr.f32.mxu0 0.0
      %v2152 = vand.u32 %v1193, 4294901760
      %v2153 = vsub.f32 %v1193, %v2152
      %v2154 = vand.u32 %v2153, 4294901760
      %2155 = vmatmul.mubr.f32.gmra.mrb[0].mxu0 %v2154
      %v2156 = vpop.f32.mrb[0].mxu0
      %v2157 = vadd.f32 %v2061, %v2156
      %v2158 = vpop.f32.mrb[0].mxu0
      %2159 = vmatprep.mubr.f32.mxu0 0.0
      %v2160 = vand.u32 %v1196, 4294901760
      %v2161 = vsub.f32 %v1196, %v2160
      %v2162 = vand.u32 %v2161, 4294901760
      %2163 = vmatmul.mubr.f32.gmra.mrb[0].mxu0 %v2162
      %v2164 = vpop.f32.mrb[0].mxu0
      %v2165 = vadd.f32 %v2068, %v2164
      %v2166 = vpop.f32.mrb[0].mxu0
      %2167 = vmatprep.mubr.f32.mxu0 0.0
      %v2168 = vand.u32 %v1199, 4294901760
      %v2169 = vsub.f32 %v1199, %v2168
      %v2170 = vand.u32 %v2169, 4294901760
      %2171 = vmatmul.mubr.f32.gmra.mrb[0].mxu0 %v2170
      %v2172 = vpop.f32.mrb[0].mxu0
      %v2173 = vadd.f32 %v2075, %v2172
      %v2174 = vpop.f32.mrb[0].mxu0
      %2175 = vdwg.mxu0
      %2176 = vmatprep.subr.mxu0 0.0
      %v2177 = vand.u32 %v1781, 4294901760
      %v2178 = vsub.f32 %v1781, %v2177
      %v2179 = vand.u32 %v2178, 4294901760
      %2180 = vmatpush1.msra.mxu0 %v2179
      %2181 = vmatprep.subr.mxu0 0.0
      %2182 = vmatpush1.msra.mxu0 0.0
      %2183 = vmatprep.subr.mxu0 0.0
      %2184 = vmatpush1.msra.mxu0 0.0
      %2185 = vmatprep.subr.mxu0 0.0
      %2186 = vmatpush1.msra.mxu0 0.0
      %2187 = vmatprep.subr.mxu0 0.0
      %2188 = vmatpush1.msra.mxu0 0.0
      %2189 = vmatprep.subr.mxu0 0.0
      %2190 = vmatpush1.msra.mxu0 0.0
      %2191 = vmatprep.subr.mxu0 0.0
      %2192 = vmatpush1.msra.mxu0 0.0
      %2193 = vmatprep.subr.mxu0 0.0
      %2194 = vmatpush1.msra.mxu0 0.0
      %2195 = vmatprep.subr.mxu0 0.0
      %2196 = vmatpush1.msra.mxu0 0.0
      %2197 = vmatprep.subr.mxu0 0.0
      %2198 = vmatpush1.msra.mxu0 0.0
      %2199 = vmatprep.subr.mxu0 0.0
      %2200 = vmatpush1.msra.mxu0 0.0
      %2201 = vmatprep.subr.mxu0 0.0
      %2202 = vmatpush1.msra.mxu0 0.0
      %2203 = vmatprep.subr.mxu0 0.0
      %2204 = vmatpush1.msra.mxu0 0.0
      %2205 = vmatprep.subr.mxu0 0.0
      %2206 = vmatpush1.msra.mxu0 0.0
      %2207 = vmatprep.subr.mxu0 0.0
      %2208 = vmatpush1.msra.mxu0 0.0
      %2209 = vmatprep.subr.mxu0 0.0
      %2210 = vmatpush1.msra.mxu0 0.0
      %2211 = vmatprep.subr.mxu0 0.0
      %2212 = vmatpush1.msra.mxu0 0.0
      %2213 = vmatprep.subr.mxu0 0.0
      %2214 = vmatpush1.msra.mxu0 0.0
      %2215 = vmatprep.subr.mxu0 0.0
      %2216 = vmatpush1.msra.mxu0 0.0
      %2217 = vmatprep.subr.mxu0 0.0
      %2218 = vmatpush1.msra.mxu0 0.0
      %2219 = vmatprep.subr.mxu0 0.0
      %2220 = vmatpush1.msra.mxu0 0.0
      %2221 = vmatprep.subr.mxu0 0.0
      %2222 = vmatpush1.msra.mxu0 0.0
      %2223 = vmatprep.subr.mxu0 0.0
      %2224 = vmatpush1.msra.mxu0 0.0
      %2225 = vmatprep.subr.mxu0 0.0
      %2226 = vmatpush1.msra.mxu0 0.0
      %2227 = vmatprep.subr.mxu0 0.0
      %2228 = vmatpush1.msra.mxu0 0.0
      %2229 = vmatprep.subr.mxu0 0.0
      %2230 = vmatpush1.msra.mxu0 0.0
      %2231 = vmatprep.subr.mxu0 0.0
      %2232 = vmatpush1.msra.mxu0 0.0
      %2233 = vmatprep.subr.mxu0 0.0
      %2234 = vmatpush1.msra.mxu0 0.0
      %2235 = vmatprep.subr.mxu0 0.0
      %2236 = vmatpush1.msra.mxu0 0.0
      %2237 = vmatprep.subr.mxu0 0.0
      %2238 = vmatpush1.msra.mxu0 0.0
      %2239 = vmatprep.subr.mxu0 0.0
      %2240 = vmatpush1.msra.mxu0 0.0
      %2241 = vmatprep.subr.mxu0 0.0
      %2242 = vmatpush1.msra.mxu0 0.0
      %2243 = vmatprep.mubr.f32.mxu0 0.0
      %v2244 = vand.u32 %v1190, 4294901760
      %2245 = vmatmul.mubr.f32.gmra.mrb[0].mxu0 %v2244
      %v2246 = vpop.f32.mrb[0].mxu0
      %v2247 = vadd.f32 %v2149, %v2246
      %v2248 = vpop.f32.mrb[0].mxu0
      %2249 = vmatprep.mubr.f32.mxu0 0.0
      %v2250 = vand.u32 %v1193, 4294901760
      %2251 = vmatmul.mubr.f32.gmra.mrb[0].mxu0 %v2250
      %v2252 = vpop.f32.mrb[0].mxu0
      %v2253 = vadd.f32 %v2157, %v2252
      %v2254 = vpop.f32.mrb[0].mxu0
      %2255 = vmatprep.mubr.f32.mxu0 0.0
      %v2256 = vand.u32 %v1196, 4294901760
      %2257 = vmatmul.mubr.f32.gmra.mrb[0].mxu0 %v2256
      %v2258 = vpop.f32.mrb[0].mxu0
      %v2259 = vadd.f32 %v2165, %v2258
      %v2260 = vpop.f32.mrb[0].mxu0
      %2261 = vmatprep.mubr.f32.mxu0 0.0
      %v2262 = vand.u32 %v1199, 4294901760
      %2263 = vmatmul.mubr.f32.gmra.mrb[0].mxu0 %v2262
      %v2264 = vpop.f32.mrb[0].mxu0
      %v2265 = vadd.f32 %v2173, %v2264
      %v2266 = vpop.f32.mrb[0].mxu0
      %2267 = vdwg.mxu0
      %2268 = vmatprep.subr.mxu0 0.0
      %v2269 = vand.u32 %v1781, 4294901760
      %2270 = vmatpush1.msra.mxu0 %v2269
      %2271 = vmatprep.subr.mxu0 0.0
      %2272 = vmatpush1.msra.mxu0 0.0
      %2273 = vmatprep.subr.mxu0 0.0
      %2274 = vmatpush1.msra.mxu0 0.0
      %2275 = vmatprep.subr.mxu0 0.0
      %2276 = vmatpush1.msra.mxu0 0.0
      %2277 = vmatprep.subr.mxu0 0.0
      %2278 = vmatpush1.msra.mxu0 0.0
      %2279 = vmatprep.subr.mxu0 0.0
      %2280 = vmatpush1.msra.mxu0 0.0
      %2281 = vmatprep.subr.mxu0 0.0
      %2282 = vmatpush1.msra.mxu0 0.0
      %2283 = vmatprep.subr.mxu0 0.0
      %2284 = vmatpush1.msra.mxu0 0.0
      %2285 = vmatprep.subr.mxu0 0.0
      %2286 = vmatpush1.msra.mxu0 0.0
      %2287 = vmatprep.subr.mxu0 0.0
      %2288 = vmatpush1.msra.mxu0 0.0
      %2289 = vmatprep.subr.mxu0 0.0
      %2290 = vmatpush1.msra.mxu0 0.0
      %2291 = vmatprep.subr.mxu0 0.0
      %2292 = vmatpush1.msra.mxu0 0.0
      %2293 = vmatprep.subr.mxu0 0.0
      %2294 = vmatpush1.msra.mxu0 0.0
      %2295 = vmatprep.subr.mxu0 0.0
      %2296 = vmatpush1.msra.mxu0 0.0
      %2297 = vmatprep.subr.mxu0 0.0
      %2298 = vmatpush1.msra.mxu0 0.0
      %2299 = vmatprep.subr.mxu0 0.0
      %2300 = vmatpush1.msra.mxu0 0.0
      %2301 = vmatprep.subr.mxu0 0.0
      %2302 = vmatpush1.msra.mxu0 0.0
      %2303 = vmatprep.subr.mxu0 0.0
      %2304 = vmatpush1.msra.mxu0 0.0
      %2305 = vmatprep.subr.mxu0 0.0
      %2306 = vmatpush1.msra.mxu0 0.0
      %2307 = vmatprep.subr.mxu0 0.0
      %2308 = vmatpush1.msra.mxu0 0.0
      %2309 = vmatprep.subr.mxu0 0.0
      %2310 = vmatpush1.msra.mxu0 0.0
      %2311 = vmatprep.subr.mxu0 0.0
      %2312 = vmatpush1.msra.mxu0 0.0
      %2313 = vmatprep.subr.mxu0 0.0
      %2314 = vmatpush1.msra.mxu0 0.0
      %2315 = vmatprep.subr.mxu0 0.0
      %2316 = vmatpush1.msra.mxu0 0.0
      %2317 = vmatprep.subr.mxu0 0.0
      %2318 = vmatpush1.msra.mxu0 0.0
      %2319 = vmatprep.subr.mxu0 0.0
      %2320 = vmatpush1.msra.mxu0 0.0
      %2321 = vmatprep.subr.mxu0 0.0
      %2322 = vmatpush1.msra.mxu0 0.0
      %2323 = vmatprep.subr.mxu0 0.0
      %2324 = vmatpush1.msra.mxu0 0.0
      %2325 = vmatprep.subr.mxu0 0.0
      %2326 = vmatpush1.msra.mxu0 0.0
      %2327 = vmatprep.subr.mxu0 0.0
      %2328 = vmatpush1.msra.mxu0 0.0
      %2329 = vmatprep.subr.mxu0 0.0
      %2330 = vmatpush1.msra.mxu0 0.0
      %2331 = vmatprep.subr.mxu0 0.0
      %2332 = vmatpush1.msra.mxu0 0.0
      %2333 = vmatprep.mubr.f32.mxu0 0.0
      %v2334 = vand.u32 %v1190, 4294901760
      %2335 = vmatmul.mubr.f32.gmra.mrb[0].mxu0 %v2334
      %v2336 = vpop.f32.mrb[0].mxu0
      %v2337 = vadd.f32 %v2247, %v2336
      %v2338 = vpop.f32.mrb[0].mxu0
      %2339 = vmatprep.mubr.f32.mxu0 0.0
      %v2340 = vand.u32 %v1193, 4294901760
      %2341 = vmatmul.mubr.f32.gmra.mrb[0].mxu0 %v2340
      %v2342 = vpop.f32.mrb[0].mxu0
      %v2343 = vadd.f32 %v2253, %v2342
      %v2344 = vpop.f32.mrb[0].mxu0
      %2345 = vmatprep.mubr.f32.mxu0 0.0
      %v2346 = vand.u32 %v1196, 4294901760
      %2347 = vmatmul.mubr.f32.gmra.mrb[0].mxu0 %v2346
      %v2348 = vpop.f32.mrb[0].mxu0
      %v2349 = vadd.f32 %v2259, %v2348
      %v2350 = vpop.f32.mrb[0].mxu0
      %2351 = vmatprep.mubr.f32.mxu0 0.0
      %v2352 = vand.u32 %v1199, 4294901760
      %2353 = vmatmul.mubr.f32.gmra.mrb[0].mxu0 %v2352
      %v2354 = vpop.f32.mrb[0].mxu0
      %v2355 = vadd.f32 %v2265, %v2354
      %v2356 = vpop.f32.mrb[0].mxu0
      %2357 = vdwg.mxu0
      %v2358 = vxor.u32 %v2337, 2147483648
      %v2359 = vxor.u32 %v2343, 2147483648
      %v2360 = vxor.u32 %v2349, 2147483648
      %v2361 = vxor.u32 %v2355, 2147483648
      %v2362 = vmul.f32 %v2358, 1.442695
      %v2363 = vpow.pop %v2362
      %v2364 = vmul.f32 %v2359, 1.442695
      %v2365 = vpow.pop %v2364
      %v2366 = vmul.f32 %v2360, 1.442695
      %v2367 = vpow.pop %v2366
      %v2368 = vmul.f32 %v2361, 1.442695
      %v2369 = vpow.pop %v2368
      %v2370 = vadd.f32 %v2363, 1.0
      %v2371 = vadd.f32 %v2365, 1.0
      %v2372 = vadd.f32 %v2367, 1.0
      %v2373 = vadd.f32 %v2369, 1.0
      %v2374 = vrcp.pop %v2370
      %v2375 = vmul.f32 1.0, %v2374
      %v2376 = vrcp.pop %v2371
      %v2377 = vmul.f32 1.0, %v2376
      %v2378 = vrcp.pop %v2372
      %v2379 = vmul.f32 1.0, %v2378
      %v2380 = vrcp.pop %v2373
      %v2381 = vmul.f32 1.0, %v2380
      %2383 = vset.pattern.permute.xlu0 0
      %2384 = vperm.xlu0 %2383, %v2375
      %v2385 = vpop.permute.xlu0 %2384
      %2388 = vset.pattern.permute.xlu0 0
      %2389 = vperm.xlu0 %2388, %v2377
      %v2390 = vpop.permute.xlu0 %2389
      %2393 = vset.pattern.permute.xlu0 0
      %2394 = vperm.xlu0 %2393, %v2379
      %v2395 = vpop.permute.xlu0 %2394
      %2398 = vset.pattern.permute.xlu0 0
      %2399 = vperm.xlu0 %2398, %v2381
      %v2400 = vpop.permute.xlu0 %2399
      %v2402 = vmul.f32 %v176, %v2385
      %v2403 = vmul.f32 %v177, %v2385
      %v2404 = vmul.f32 %v178, %v2390
      %v2405 = vmul.f32 %v179, %v2390
      %v2406 = vmul.f32 %v180, %v2395
      %v2407 = vmul.f32 %v181, %v2395
      %v2408 = vmul.f32 %v182, %v2400
      %v2409 = vmul.f32 %v183, %v2400
      %2410 = vst [vmem:[%s170] sm:$0xff] %v2402
      %2411 = vst [vmem:[%s170 + $0x8] sm:$0xff] %v2403
      %2412 = vst [vmem:[%s170 + $0x10] sm:$0xff] %v2404
      %2413 = vst [vmem:[%s170 + $0x18] sm:$0xff] %v2405
      %2414 = vst [vmem:[%s170 + $0x20] sm:$0xff] %v2406
      %2415 = vst [vmem:[%s170 + $0x28] sm:$0xff] %v2407
      %2416 = vst [vmem:[%s170 + $0x30] sm:$0xff] %v2408
      %2417 = vst [vmem:[%s170 + $0x38] sm:$0xff] %v2409
      %p2418 = scmp.lt.s32.totalorder %s14, 1
      %s2419 = scalar_select %p2418, %s14, 1
      %s2420 = smul.addr %s2419, 8
      %s2421 = smul.addr %s2420, 8
      %s2422 = scalar_lea.vmem %s3, %s2421
      // Predicated region
      $region33: #{channel_attention.1} parent=31 // pred_check
        %p2423 = pneg %p100
      $region34: #{channel_attention.1} parent=31 // pred_check_branch
        %2425 = sbr.rel (%p2423) target = $region36
      $region35: #{channel_attention.1} parent=31 // pred_region
        _
      $region36: #{channel_attention.1} parent=31 // pred_fallthru
        _
    $region32: #{channel_attention.1} parent=5 // pred_fallthru
      _
    %p2426 = scmp.le.s32.totalorder 2, %s9
    // Predicated region
    $region37: #{channel_attention.1} parent=5 // pred_check
      %p2427 = pneg %p2426
    $region38: #{channel_attention.1} parent=5 // pred_check_branch
      %2429 = sbr.rel (%p2427) target = $region40
    $region39: #{channel_attention.1} parent=5 // pred_region
      %s2430 = ssub.s32 %s9, 2
      // Predicated region
      $region41: #{channel_attention.1} parent=39 // pred_check
        %p2431 = pneg %p106
      $region42: #{channel_attention.1} parent=39 // pred_check_branch
        %2433 = sbr.rel (%p2431) target = $region44
      $region43: #{channel_attention.1} parent=39 // pred_region
        %p2434 = scmp.lt.s32.totalorder %s15, 1
        %s2435 = scalar_select %p2434, %s15, 1
        %s2436 = smul.addr %s2435, 8
        %s2437 = smul.addr %s2436, 8
        %s2438 = scalar_lea.vmem %s3, %s2437
      $region44: #{channel_attention.1} parent=39 // pred_fallthru
        _
    $region40: #{channel_attention.1} parent=5 // pred_fallthru
      _
  $region6: #{channel_attention.1} parent=0 // loop_footer
    %s13 = sadd.s32 1, %s9
  $region7: #{channel_attention.1} parent=0 // loop_footer_branch
    %8 = sbr.rel target = $region3
  $region8: #{channel_attention.1} parent=0 // loop_exit
    _

</llo_original>
